<compile_context>
chip_gen: v7x
topology: tpu7x:2x2x1
jax: 0.10.0
libtpu: 0.0.40
codegen_flags: <defaults>
</compile_context>

<pallas_src>
import functools

import jax
import jax.numpy as jnp
from jax import lax
from jax.experimental import pallas as pl
from jax.experimental.pallas import tpu as pltpu

LANE = 128      # lane width: the 4H gate slab is rounded up to a multiple of this
SUBLANE = 8     # f32 sublane tile: batch is padded to a multiple of this


def _round_up(n, m):
    return ((n + m - 1) // m) * m


# ----------------------------- fused Pallas kernel ---------------------------

def fused_lstm_fc_kernel(x_ref, wih1_ref, whh1_ref, b1_ref,
                         wih2_ref, whh2_ref, b2_ref,
                         fcw_ref, fcb_ref,
                         out_ref,
                         z1_ref, z2_ref, h1c_ref):
    """Two stacked LSTM layers + final Linear, fully fused in VMEM.

    x_ref   : (T*Bp, D)   bf16 time-major input rows (row t*Bp + b == x[b, t])
    wih*_ref: (Din, G)    bf16 W_ih^T, G = round_up(4H, 128), gate k at cols [k*H,(k+1)*H)
    whh*_ref: (H, G)      bf16 W_hh^T
    b*_ref  : (1, G)      f32  b_ih + b_hh
    fcw_ref : (H, O)      bf16 fc.weight^T
    fcb_ref : (1, O)      f32  fc.bias
    out_ref : (Bp, O)     f32  output (first B rows valid)
    z1_ref  : (T*Bp, G)   f32 scratch: layer-1 gate pre-activations (hoisted)
    z2_ref  : (T*Bp, G)   f32 scratch: layer-2 gate pre-activations (chunked fill)
    h1c_ref : (Ct*Bp, H)  f32 scratch: layer-1 hidden states, current chunk only
    """
    bp = out_ref.shape[0]
    hid = whh1_ref.shape[0]
    tb = z1_ref.shape[0]
    seq_len = tb // bp
    chunk_t = h1c_ref.shape[0] // bp
    n_chunks = seq_len // chunk_t

    whh1 = whh1_ref[...]
    whh2 = whh2_ref[...]
    wih2 = wih2_ref[...]
    b2 = b2_ref[...]

    def lstm_cell(z, c):
        # PyTorch gate order i, f, g, o at native H stride inside the G slab.
        i = jax.nn.sigmoid(z[:, 0 * hid:1 * hid])
        f = jax.nn.sigmoid(z[:, 1 * hid:2 * hid])
        g = jnp.tanh(z[:, 2 * hid:3 * hid])
        o = jax.nn.sigmoid(z[:, 3 * hid:4 * hid])
        c = f * c + i * g
        h = o * jnp.tanh(c)
        return h, c

    # ---- Layer-1 input projection, hoisted: ONE MXU matmul over all rows ----
    z1_ref[...] = jnp.dot(x_ref[...], wih1_ref[...],
                          preferred_element_type=jnp.float32) + b1_ref[...]

    zeros = jnp.zeros((bp, hid), jnp.float32)

    # ---- Layer-1 recurrence, chunked over time.  The layer-2 input projection
    # for each chunk is issued right after that chunk's serial steps, so the
    # bulk MXU work is interleaved with the recurrence instead of serialized
    # after it, and the layer-1 hidden scratch only needs one chunk.
    def chunk_body(cidx, carry):
        h, c = carry
        base = pl.multiple_of(cidx * (chunk_t * bp), SUBLANE)

        def step(s, hc):
            h, c = hc
            r = pl.multiple_of(base + s * bp, SUBLANE)
            z = z1_ref[pl.ds(r, bp), :] + jnp.dot(
                h.astype(jnp.bfloat16), whh1, preferred_element_type=jnp.float32)
            h, c = lstm_cell(z, c)
            h1c_ref[pl.ds(pl.multiple_of(s * bp, SUBLANE), bp), :] = h
            return (h, c)

        h, c = lax.fori_loop(0, chunk_t, step, (h, c), unroll=True)

        # Layer-2 gate pre-activations for the rows just produced.
        z2_ref[pl.ds(base, chunk_t * bp), :] = jnp.dot(
            h1c_ref[...].astype(jnp.bfloat16), wih2,
            preferred_element_type=jnp.float32) + b2
        return (h, c)

    _ = lax.fori_loop(0, n_chunks, chunk_body, (zeros, zeros))

    # ---- Layer-2 recurrence (pre-activations already in z2) -----------------
    def step2(t, hc):
        h, c = hc
        r = pl.multiple_of(t * bp, SUBLANE)
        z = z2_ref[pl.ds(r, bp), :] + jnp.dot(
            h.astype(jnp.bfloat16), whh2, preferred_element_type=jnp.float32)
        return lstm_cell(z, c)

    h2, _ = lax.fori_loop(0, seq_len, step2, (zeros, zeros),
                          unroll=min(seq_len, 8))

    # ---- Final Linear on the last timestep's layer-2 hidden state -----------
    out_ref[...] = jnp.dot(h2.astype(jnp.bfloat16), fcw_ref[...],
                           preferred_element_type=jnp.float32) + fcb_ref[...]


# ----------------------------- wrapper ----------------------------------------

def lstm_model_forward(x, kp, *, chunk_t=8):
    """x: (B, T, input_size) f32 -> (B, output_size) f32 (PyTorch semantics)."""
    batch, seq_len, d_in = x.shape
    layers = kp["layers"]
    assert len(layers) == 2, "fused kernel implements num_layers=2 (as in the module)"
    hid = layers[0]["whh"].shape[0]
    gw = layers[0]["whh"].shape[1]
    out_features = kp["fcw"].shape[1]

    bp = _round_up(batch, SUBLANE)
    ct = max(1, min(seq_len, chunk_t, 8))          # capped unroll per chunk
    while seq_len % ct:
        ct -= 1

    # Time-major, batch padded to a full sublane tile, bf16 MXU operand.
    x_tm = jnp.transpose(x, (1, 0, 2))                          # (T, B, D)
    x_tm = jnp.pad(x_tm, ((0, 0), (0, bp - batch), (0, 0)))     # (T, Bp, D)
    x_tm = x_tm.reshape(seq_len * bp, d_in).astype(jnp.bfloat16)

    l1, l2 = layers
    operands = (x_tm, l1["wih"], l1["whh"], l1["b"],
                l2["wih"], l2["whh"], l2["b"], kp["fcw"], kp["fcb"])

    scratch_shapes = [
        pltpu.VMEM((seq_len * bp, gw), jnp.float32),   # z1: layer-1 pre-acts
        pltpu.VMEM((seq_len * bp, gw), jnp.float32),   # z2: layer-2 pre-acts
        pltpu.VMEM((ct * bp, hid), jnp.float32),       # layer-1 h, one chunk
    ]
    scratch_bytes = (2 * seq_len * bp * gw + ct * bp * hid) * 4
    operand_bytes = sum(int(a.size) * a.dtype.itemsize for a in operands)
    out_bytes = bp * out_features * 4
    vmem_limit = int(min(100 * 1024 * 1024,
                         max(16 * 1024 * 1024,
                             2 * (scratch_bytes + operand_bytes + out_bytes))))

    vmem = lambda: pl.BlockSpec(memory_space=pltpu.MemorySpace.VMEM)
    out = pl.pallas_call(
        fused_lstm_fc_kernel,
        out_shape=jax.ShapeDtypeStruct((bp, out_features), jnp.float32),
        in_specs=[vmem() for _ in operands],
        out_specs=vmem(),
        scratch_shapes=scratch_shapes,
        compiler_params=pltpu.CompilerParams(vmem_limit_bytes=vmem_limit),
    )(*operands)
    return out[:batch]


# ----------------------------- parameter prep ---------------------------------

def _pad_cols(w, width):
    pad = width - w.shape[-1]
    if pad == 0:
        return w
    return jnp.pad(w, ((0, 0), (0, pad)))


def prepare_kernel_params(raw):
    """Transpose, fuse biases, pack gates at native H stride in a lane-rounded
    4H slab, and cast MXU operands to bf16 (accumulation stays f32 in-kernel)."""
    hid = raw["lstm"][0]["w_hh"].shape[1]
    gw = _round_up(4 * hid, LANE)
    layers = []
    for lyr in raw["lstm"]:
        layers.append({
            "wih": _pad_cols(lyr["w_ih"].T, gw).astype(jnp.bfloat16),   # (Din, G)
            "whh": _pad_cols(lyr["w_hh"].T, gw).astype(jnp.bfloat16),   # (H, G)
            "b": _pad_cols((lyr["b_ih"] + lyr["b_hh"]).reshape(1, -1), gw),  # (1, G) f32
        })
    return {
        "layers": layers,
        "fcw": raw["fc_w"].T.astype(jnp.bfloat16),   # (H, O)
        "fcb": raw["fc_b"].reshape(1, -1),           # (1, O) f32
    }


def init_raw_params(key, input_size, hidden_size, num_layers, output_size):
    """PyTorch-style raw LSTM/Linear parameters."""
    bound = hidden_size ** -0.5
    raw = {"lstm": []}
    d_in = input_size
    for _ in range(num_layers):
        key, k1, k2, k3, k4 = jax.random.split(key, 5)
        raw["lstm"].append({
            "w_ih": jax.random.uniform(k1, (4 * hidden_size, d_in), jnp.float32, -bound, bound),
            "w_hh": jax.random.uniform(k2, (4 * hidden_size, hidden_size), jnp.float32, -bound, bound),
            "b_ih": jax.random.uniform(k3, (4 * hidden_size,), jnp.float32, -bound, bound),
            "b_hh": jax.random.uniform(k4, (4 * hidden_size,), jnp.float32, -bound, bound),
        })
        d_in = hidden_size
    key, k5, k6 = jax.random.split(key, 3)
    raw["fc_w"] = jax.random.uniform(k5, (output_size, hidden_size), jnp.float32, -bound, bound)
    raw["fc_b"] = jax.random.uniform(k6, (output_size,), jnp.float32, -bound, bound)
    return raw


# ----------------------------- pure-JAX reference -----------------------------

def lstm_model_reference(x, raw):
    """Mirrors PyTorch nn.LSTM(batch_first=True) + nn.Linear on out[:, -1, :]."""
    batch = x.shape[0]
    h_seq = jnp.transpose(x, (1, 0, 2))  # (T, B, D)
    for lyr in raw["lstm"]:
        w_ih, w_hh = lyr["w_ih"], lyr["w_hh"]
        bias = lyr["b_ih"] + lyr["b_hh"]
        hid = w_hh.shape[1]

        def step(carry, x_t, w_ih=w_ih, w_hh=w_hh, bias=bias, hid=hid):
            h, c = carry
            z = x_t @ w_ih.T + h @ w_hh.T + bias
            i = jax.nn.sigmoid(z[:, :hid])
            f = jax.nn.sigmoid(z[:, hid:2 * hid])
            g = jnp.tanh(z[:, 2 * hid:3 * hid])
            o = jax.nn.sigmoid(z[:, 3 * hid:])
            c = f * c + i * g
            h = o * jnp.tanh(c)
            return (h, c), h

        init = (jnp.zeros((batch, hid), jnp.float32),
                jnp.zeros((batch, hid), jnp.float32))
        _, h_seq = lax.scan(step, init, h_seq)
    return h_seq[-1] @ raw["fc_w"].T + raw["fc_b"]


# ----------------------------- main --------------------------------------------

if __name__ == "__main__":
    batch, seq_len = 2, 8
    input_size, hidden_size, num_layers, output_size = 4, 32, 2, 1

    key = jax.random.PRNGKey(0)
    key, kx = jax.random.split(key)
    x = jax.random.normal(kx, (batch, seq_len, input_size), jnp.float32)

    raw = init_raw_params(key, input_size, hidden_size, num_layers, output_size)
    kparams = prepare_kernel_params(raw)

    fwd = jax.jit(functools.partial(lstm_model_forward, chunk_t=4))
    out = jax.block_until_ready(fwd(x, kparams))
    ref = jax.block_until_ready(lstm_model_reference(x, raw))

    assert out.shape == (batch, output_size), out.shape
    # bf16 MXU operands (f32 accumulation) -> loosened parity vs f32 reference.
    assert jnp.allclose(out, ref, atol=5e-2, rtol=5e-2), (out, ref)
    print("KERNEL_OK")
</pallas_src>

<mosaic_0001>
module attributes {stable_mosaic.version = 11 : i64} {
  func.func @fused_lstm_fc_kernel(%arg0: memref<64x4xbf16, #tpu.memory_space<vmem>>, %arg1: memref<4x128xbf16, #tpu.memory_space<vmem>>, %arg2: memref<32x128xbf16, #tpu.memory_space<vmem>>, %arg3: memref<1x128xf32, #tpu.memory_space<vmem>>, %arg4: memref<32x128xbf16, #tpu.memory_space<vmem>>, %arg5: memref<32x128xbf16, #tpu.memory_space<vmem>>, %arg6: memref<1x128xf32, #tpu.memory_space<vmem>>, %arg7: memref<32x1xbf16, #tpu.memory_space<vmem>>, %arg8: memref<1x1xf32, #tpu.memory_space<vmem>>, %arg9: memref<8x1xf32, #tpu.memory_space<vmem>>, %arg10: memref<64x128xf32, #tpu.memory_space<vmem>>, %arg11: memref<64x128xf32, #tpu.memory_space<vmem>>, %arg12: memref<32x32xf32, #tpu.memory_space<vmem>>) attributes {dimension_semantics = [], scalar_prefetch = 0 : i64, scratch_operands = 3 : i64, tpu.core_type = #tpu.core_type<tc>} {
    %c0 = arith.constant 0 : index
    %c0_0 = arith.constant 0 : index
    %0 = vector.load %arg2[%c0, %c0_0] : memref<32x128xbf16, #tpu.memory_space<vmem>>, vector<32x128xbf16>
    %c0_1 = arith.constant 0 : index
    %c0_2 = arith.constant 0 : index
    %1 = vector.load %arg5[%c0_1, %c0_2] : memref<32x128xbf16, #tpu.memory_space<vmem>>, vector<32x128xbf16>
    %c0_3 = arith.constant 0 : index
    %c0_4 = arith.constant 0 : index
    %2 = vector.load %arg4[%c0_3, %c0_4] : memref<32x128xbf16, #tpu.memory_space<vmem>>, vector<32x128xbf16>
    %c0_5 = arith.constant 0 : index
    %c0_6 = arith.constant 0 : index
    %3 = vector.load %arg6[%c0_5, %c0_6] : memref<1x128xf32, #tpu.memory_space<vmem>>, vector<1x128xf32>
    %c0_7 = arith.constant 0 : index
    %c0_8 = arith.constant 0 : index
    %4 = vector.load %arg0[%c0_7, %c0_8] : memref<64x4xbf16, #tpu.memory_space<vmem>>, vector<64x4xbf16>
    %c0_9 = arith.constant 0 : index
    %c0_10 = arith.constant 0 : index
    %5 = vector.load %arg1[%c0_9, %c0_10] : memref<4x128xbf16, #tpu.memory_space<vmem>>, vector<4x128xbf16>
    %cst = arith.constant dense<0.000000e+00> : vector<64x128xf32>
    %6 = tpu.matmul %4, %5, %cst {dimension_numbers = #tpu.dot_dimension_numbers<[1], [0], [0], [1], [0, 0, 1, 1], [], []>} : vector<64x4xbf16>, vector<4x128xbf16>, vector<64x128xf32> -> vector<64x128xf32>
    %c0_11 = arith.constant 0 : index
    %c0_12 = arith.constant 0 : index
    %7 = vector.load %arg3[%c0_11, %c0_12] : memref<1x128xf32, #tpu.memory_space<vmem>>, vector<1x128xf32>
    %8 = vector.broadcast %7 : vector<1x128xf32> to vector<64x128xf32>
    %9 = arith.addf %6, %8 : vector<64x128xf32>
    %c0_13 = arith.constant 0 : index
    %c0_14 = arith.constant 0 : index
    %10 = vector.load %arg10[%c0_13, %c0_14] : memref<64x128xf32, #tpu.memory_space<vmem>>, vector<64x128xf32>
    tpu.vector_store %arg10[%c0_13, %c0_14], %9 {strides = array<i32>} : memref<64x128xf32, #tpu.memory_space<vmem>>, vector<64x128xf32>,
    %cst_15 = arith.constant 0.000000e+00 : f32
    %11 = vector.broadcast %cst_15 : f32 to vector<8x32xf32>
    %c0_i32 = arith.constant 0 : i32
    %c2_i32 = arith.constant 2 : i32
    %12 = arith.addi %c0_i32, %c2_i32 : i32
    %c1_i32 = arith.constant 1 : i32
    %13:2 = scf.for %arg13 = %c0_i32 to %12 step %c1_i32 iter_args(%arg14 = %11, %arg15 = %11) -> (vector<8x32xf32>, vector<8x32xf32>)  : i32 {
      %c32_i32 = arith.constant 32 : i32
      %277 = arith.muli %arg13, %c32_i32 : i32
      %278 = tpu.assume_multiple %277, 8 : i32
      %c0_i32_75 = arith.constant 0 : i32
      %c8_i32_76 = arith.constant 8 : i32
      %279 = arith.muli %c0_i32_75, %c8_i32_76 : i32
      %280 = arith.addi %278, %279 : i32
      %281 = tpu.assume_multiple %280, 8 : i32
      %282 = arith.index_cast %281 : i32 to index
      %c0_77 = arith.constant 0 : index
      %283 = vector.load %arg10[%282, %c0_77] : memref<64x128xf32, #tpu.memory_space<vmem>>, vector<8x128xf32>
      %284 = arith.truncf %arg14 : vector<8x32xf32> to vector<8x32xbf16>
      %cst_78 = arith.constant dense<0.000000e+00> : vector<8x128xf32>
      %285 = tpu.matmul %284, %0, %cst_78 {dimension_numbers = #tpu.dot_dimension_numbers<[1], [0], [0], [1], [0, 0, 1, 1], [], []>} : vector<8x32xbf16>, vector<32x128xbf16>, vector<8x128xf32> -> vector<8x128xf32>
      %286 = arith.addf %283, %285 : vector<8x128xf32>
      %287 = vector.extract_strided_slice %286 {offsets = [0, 0], sizes = [8, 32], strides = [1, 1]} : vector<8x128xf32> to vector<8x32xf32>
      %288 = arith.negf %287 : vector<8x32xf32>
      %289 = math.exp %288 : vector<8x32xf32>
      %cst_79 = arith.constant 1.000000e+00 : f32
      %290 = vector.broadcast %cst_79 : f32 to vector<8x32xf32>
      %291 = arith.addf %290, %289 : vector<8x32xf32>
      %292 = arith.divf %290, %291 : vector<8x32xf32>
      %293 = vector.extract_strided_slice %286 {offsets = [0, 32], sizes = [8, 32], strides = [1, 1]} : vector<8x128xf32> to vector<8x32xf32>
      %294 = arith.negf %293 : vector<8x32xf32>
      %295 = math.exp %294 : vector<8x32xf32>
      %cst_80 = arith.constant 1.000000e+00 : f32
      %296 = vector.broadcast %cst_80 : f32 to vector<8x32xf32>
      %297 = arith.addf %296, %295 : vector<8x32xf32>
      %298 = arith.divf %296, %297 : vector<8x32xf32>
      %299 = vector.extract_strided_slice %286 {offsets = [0, 64], sizes = [8, 32], strides = [1, 1]} : vector<8x128xf32> to vector<8x32xf32>
      %300 = math.tanh %299 : vector<8x32xf32>
      %301 = vector.extract_strided_slice %286 {offsets = [0, 96], sizes = [8, 32], strides = [1, 1]} : vector<8x128xf32> to vector<8x32xf32>
      %302 = arith.negf %301 : vector<8x32xf32>
      %303 = math.exp %302 : vector<8x32xf32>
      %cst_81 = arith.constant 1.000000e+00 : f32
      %304 = vector.broadcast %cst_81 : f32 to vector<8x32xf32>
      %305 = arith.addf %304, %303 : vector<8x32xf32>
      %306 = arith.divf %304, %305 : vector<8x32xf32>
      %307 = arith.mulf %298, %arg15 : vector<8x32xf32>
      %308 = arith.mulf %292, %300 : vector<8x32xf32>
      %309 = arith.addf %307, %308 : vector<8x32xf32>
      %310 = math.tanh %309 : vector<8x32xf32>
      %311 = arith.mulf %306, %310 : vector<8x32xf32>
      %c8_i32_82 = arith.constant 8 : i32
      %312 = arith.muli %c0_i32_75, %c8_i32_82 : i32
      %313 = tpu.assume_multiple %312, 8 : i32
      %314 = arith.index_cast %313 : i32 to index
      %c0_83 = arith.constant 0 : index
      %315 = vector.load %arg12[%314, %c0_83] : memref<32x32xf32, #tpu.memory_space<vmem>>, vector<8x32xf32>
      tpu.vector_store %arg12[%314, %c0_83], %311 {strides = array<i32>} : memref<32x32xf32, #tpu.memory_space<vmem>>, vector<8x32xf32>,
      %c1_i32_84 = arith.constant 1 : i32
      %c8_i32_85 = arith.constant 8 : i32
      %316 = arith.muli %c1_i32_84, %c8_i32_85 : i32
      %317 = arith.addi %278, %316 : i32
      %318 = tpu.assume_multiple %317, 8 : i32
      %319 = arith.index_cast %318 : i32 to index
      %c0_86 = arith.constant 0 : index
      %320 = vector.load %arg10[%319, %c0_86] : memref<64x128xf32, #tpu.memory_space<vmem>>, vector<8x128xf32>
      %321 = arith.truncf %311 : vector<8x32xf32> to vector<8x32xbf16>
      %cst_87 = arith.constant dense<0.000000e+00> : vector<8x128xf32>
      %322 = tpu.matmul %321, %0, %cst_87 {dimension_numbers = #tpu.dot_dimension_numbers<[1], [0], [0], [1], [0, 0, 1, 1], [], []>} : vector<8x32xbf16>, vector<32x128xbf16>, vector<8x128xf32> -> vector<8x128xf32>
      %323 = arith.addf %320, %322 : vector<8x128xf32>
      %324 = vector.extract_strided_slice %323 {offsets = [0, 0], sizes = [8, 32], strides = [1, 1]} : vector<8x128xf32> to vector<8x32xf32>
      %325 = arith.negf %324 : vector<8x32xf32>
      %326 = math.exp %325 : vector<8x32xf32>
      %cst_88 = arith.constant 1.000000e+00 : f32
      %327 = vector.broadcast %cst_88 : f32 to vector<8x32xf32>
      %328 = arith.addf %327, %326 : vector<8x32xf32>
      %329 = arith.divf %327, %328 : vector<8x32xf32>
      %330 = vector.extract_strided_slice %323 {offsets = [0, 32], sizes = [8, 32], strides = [1, 1]} : vector<8x128xf32> to vector<8x32xf32>
      %331 = arith.negf %330 : vector<8x32xf32>
      %332 = math.exp %331 : vector<8x32xf32>
      %cst_89 = arith.constant 1.000000e+00 : f32
      %333 = vector.broadcast %cst_89 : f32 to vector<8x32xf32>
      %334 = arith.addf %333, %332 : vector<8x32xf32>
      %335 = arith.divf %333, %334 : vector<8x32xf32>
      %336 = vector.extract_strided_slice %323 {offsets = [0, 64], sizes = [8, 32], strides = [1, 1]} : vector<8x128xf32> to vector<8x32xf32>
      %337 = math.tanh %336 : vector<8x32xf32>
      %338 = vector.extract_strided_slice %323 {offsets = [0, 96], sizes = [8, 32], strides = [1, 1]} : vector<8x128xf32> to vector<8x32xf32>
      %339 = arith.negf %338 : vector<8x32xf32>
      %340 = math.exp %339 : vector<8x32xf32>
      %cst_90 = arith.constant 1.000000e+00 : f32
      %341 = vector.broadcast %cst_90 : f32 to vector<8x32xf32>
      %342 = arith.addf %341, %340 : vector<8x32xf32>
      %343 = arith.divf %341, %342 : vector<8x32xf32>
      %344 = arith.mulf %335, %309 : vector<8x32xf32>
      %345 = arith.mulf %329, %337 : vector<8x32xf32>
      %346 = arith.addf %344, %345 : vector<8x32xf32>
      %347 = math.tanh %346 : vector<8x32xf32>
      %348 = arith.mulf %343, %347 : vector<8x32xf32>
      %c8_i32_91 = arith.constant 8 : i32
      %349 = arith.muli %c1_i32_84, %c8_i32_91 : i32
      %350 = tpu.assume_multiple %349, 8 : i32
      %351 = arith.index_cast %350 : i32 to index
      %c0_92 = arith.constant 0 : index
      %352 = vector.load %arg12[%351, %c0_92] : memref<32x32xf32, #tpu.memory_space<vmem>>, vector<8x32xf32>
      tpu.vector_store %arg12[%351, %c0_92], %348 {strides = array<i32>} : memref<32x32xf32, #tpu.memory_space<vmem>>, vector<8x32xf32>,
      %c2_i32_93 = arith.constant 2 : i32
      %c8_i32_94 = arith.constant 8 : i32
      %353 = arith.muli %c2_i32_93, %c8_i32_94 : i32
      %354 = arith.addi %278, %353 : i32
      %355 = tpu.assume_multiple %354, 8 : i32
      %356 = arith.index_cast %355 : i32 to index
      %c0_95 = arith.constant 0 : index
      %357 = vector.load %arg10[%356, %c0_95] : memref<64x128xf32, #tpu.memory_space<vmem>>, vector<8x128xf32>
      %358 = arith.truncf %348 : vector<8x32xf32> to vector<8x32xbf16>
      %cst_96 = arith.constant dense<0.000000e+00> : vector<8x128xf32>
      %359 = tpu.matmul %358, %0, %cst_96 {dimension_numbers = #tpu.dot_dimension_numbers<[1], [0], [0], [1], [0, 0, 1, 1], [], []>} : vector<8x32xbf16>, vector<32x128xbf16>, vector<8x128xf32> -> vector<8x128xf32>
      %360 = arith.addf %357, %359 : vector<8x128xf32>
      %361 = vector.extract_strided_slice %360 {offsets = [0, 0], sizes = [8, 32], strides = [1, 1]} : vector<8x128xf32> to vector<8x32xf32>
      %362 = arith.negf %361 : vector<8x32xf32>
      %363 = math.exp %362 : vector<8x32xf32>
      %cst_97 = arith.constant 1.000000e+00 : f32
      %364 = vector.broadcast %cst_97 : f32 to vector<8x32xf32>
      %365 = arith.addf %364, %363 : vector<8x32xf32>
      %366 = arith.divf %364, %365 : vector<8x32xf32>
      %367 = vector.extract_strided_slice %360 {offsets = [0, 32], sizes = [8, 32], strides = [1, 1]} : vector<8x128xf32> to vector<8x32xf32>
      %368 = arith.negf %367 : vector<8x32xf32>
      %369 = math.exp %368 : vector<8x32xf32>
      %cst_98 = arith.constant 1.000000e+00 : f32
      %370 = vector.broadcast %cst_98 : f32 to vector<8x32xf32>
      %371 = arith.addf %370, %369 : vector<8x32xf32>
      %372 = arith.divf %370, %371 : vector<8x32xf32>
      %373 = vector.extract_strided_slice %360 {offsets = [0, 64], sizes = [8, 32], strides = [1, 1]} : vector<8x128xf32> to vector<8x32xf32>
      %374 = math.tanh %373 : vector<8x32xf32>
      %375 = vector.extract_strided_slice %360 {offsets = [0, 96], sizes = [8, 32], strides = [1, 1]} : vector<8x128xf32> to vector<8x32xf32>
      %376 = arith.negf %375 : vector<8x32xf32>
      %377 = math.exp %376 : vector<8x32xf32>
      %cst_99 = arith.constant 1.000000e+00 : f32
      %378 = vector.broadcast %cst_99 : f32 to vector<8x32xf32>
      %379 = arith.addf %378, %377 : vector<8x32xf32>
      %380 = arith.divf %378, %379 : vector<8x32xf32>
      %381 = arith.mulf %372, %346 : vector<8x32xf32>
      %382 = arith.mulf %366, %374 : vector<8x32xf32>
      %383 = arith.addf %381, %382 : vector<8x32xf32>
      %384 = math.tanh %383 : vector<8x32xf32>
      %385 = arith.mulf %380, %384 : vector<8x32xf32>
      %c8_i32_100 = arith.constant 8 : i32
      %386 = arith.muli %c2_i32_93, %c8_i32_100 : i32
      %387 = tpu.assume_multiple %386, 8 : i32
      %388 = arith.index_cast %387 : i32 to index
      %c0_101 = arith.constant 0 : index
      %389 = vector.load %arg12[%388, %c0_101] : memref<32x32xf32, #tpu.memory_space<vmem>>, vector<8x32xf32>
      tpu.vector_store %arg12[%388, %c0_101], %385 {strides = array<i32>} : memref<32x32xf32, #tpu.memory_space<vmem>>, vector<8x32xf32>,
      %c3_i32_102 = arith.constant 3 : i32
      %c8_i32_103 = arith.constant 8 : i32
      %390 = arith.muli %c3_i32_102, %c8_i32_103 : i32
      %391 = arith.addi %278, %390 : i32
      %392 = tpu.assume_multiple %391, 8 : i32
      %393 = arith.index_cast %392 : i32 to index
      %c0_104 = arith.constant 0 : index
      %394 = vector.load %arg10[%393, %c0_104] : memref<64x128xf32, #tpu.memory_space<vmem>>, vector<8x128xf32>
      %395 = arith.truncf %385 : vector<8x32xf32> to vector<8x32xbf16>
      %cst_105 = arith.constant dense<0.000000e+00> : vector<8x128xf32>
      %396 = tpu.matmul %395, %0, %cst_105 {dimension_numbers = #tpu.dot_dimension_numbers<[1], [0], [0], [1], [0, 0, 1, 1], [], []>} : vector<8x32xbf16>, vector<32x128xbf16>, vector<8x128xf32> -> vector<8x128xf32>
      %397 = arith.addf %394, %396 : vector<8x128xf32>
      %398 = vector.extract_strided_slice %397 {offsets = [0, 0], sizes = [8, 32], strides = [1, 1]} : vector<8x128xf32> to vector<8x32xf32>
      %399 = arith.negf %398 : vector<8x32xf32>
      %400 = math.exp %399 : vector<8x32xf32>
      %cst_106 = arith.constant 1.000000e+00 : f32
      %401 = vector.broadcast %cst_106 : f32 to vector<8x32xf32>
      %402 = arith.addf %401, %400 : vector<8x32xf32>
      %403 = arith.divf %401, %402 : vector<8x32xf32>
      %404 = vector.extract_strided_slice %397 {offsets = [0, 32], sizes = [8, 32], strides = [1, 1]} : vector<8x128xf32> to vector<8x32xf32>
      %405 = arith.negf %404 : vector<8x32xf32>
      %406 = math.exp %405 : vector<8x32xf32>
      %cst_107 = arith.constant 1.000000e+00 : f32
      %407 = vector.broadcast %cst_107 : f32 to vector<8x32xf32>
      %408 = arith.addf %407, %406 : vector<8x32xf32>
      %409 = arith.divf %407, %408 : vector<8x32xf32>
      %410 = vector.extract_strided_slice %397 {offsets = [0, 64], sizes = [8, 32], strides = [1, 1]} : vector<8x128xf32> to vector<8x32xf32>
      %411 = math.tanh %410 : vector<8x32xf32>
      %412 = vector.extract_strided_slice %397 {offsets = [0, 96], sizes = [8, 32], strides = [1, 1]} : vector<8x128xf32> to vector<8x32xf32>
      %413 = arith.negf %412 : vector<8x32xf32>
      %414 = math.exp %413 : vector<8x32xf32>
      %cst_108 = arith.constant 1.000000e+00 : f32
      %415 = vector.broadcast %cst_108 : f32 to vector<8x32xf32>
      %416 = arith.addf %415, %414 : vector<8x32xf32>
      %417 = arith.divf %415, %416 : vector<8x32xf32>
      %418 = arith.mulf %409, %383 : vector<8x32xf32>
      %419 = arith.mulf %403, %411 : vector<8x32xf32>
      %420 = arith.addf %418, %419 : vector<8x32xf32>
      %421 = math.tanh %420 : vector<8x32xf32>
      %422 = arith.mulf %417, %421 : vector<8x32xf32>
      %c8_i32_109 = arith.constant 8 : i32
      %423 = arith.muli %c3_i32_102, %c8_i32_109 : i32
      %424 = tpu.assume_multiple %423, 8 : i32
      %425 = arith.index_cast %424 : i32 to index
      %c0_110 = arith.constant 0 : index
      %426 = vector.load %arg12[%425, %c0_110] : memref<32x32xf32, #tpu.memory_space<vmem>>, vector<8x32xf32>
      tpu.vector_store %arg12[%425, %c0_110], %422 {strides = array<i32>} : memref<32x32xf32, #tpu.memory_space<vmem>>, vector<8x32xf32>,
      %c4_i32_111 = arith.constant 4 : i32
      %c0_112 = arith.constant 0 : index
      %c0_113 = arith.constant 0 : index
      %427 = vector.load %arg12[%c0_112, %c0_113] : memref<32x32xf32, #tpu.memory_space<vmem>>, vector<32x32xf32>
      %428 = arith.truncf %427 : vector<32x32xf32> to vector<32x32xbf16>
      %cst_114 = arith.constant dense<0.000000e+00> : vector<32x128xf32>
      %429 = tpu.matmul %428, %2, %cst_114 {dimension_numbers = #tpu.dot_dimension_numbers<[1], [0], [0], [1], [0, 0, 1, 1], [], []>} : vector<32x32xbf16>, vector<32x128xbf16>, vector<32x128xf32> -> vector<32x128xf32>
      %430 = vector.broadcast %3 : vector<1x128xf32> to vector<32x128xf32>
      %431 = arith.addf %429, %430 : vector<32x128xf32>
      %432 = arith.index_cast %278 : i32 to index
      %c0_115 = arith.constant 0 : index
      %433 = vector.load %arg11[%432, %c0_115] : memref<64x128xf32, #tpu.memory_space<vmem>>, vector<32x128xf32>
      tpu.vector_store %arg11[%432, %c0_115], %431 {strides = array<i32>} : memref<64x128xf32, #tpu.memory_space<vmem>>, vector<32x128xf32>,
      scf.yield %422, %420 : vector<8x32xf32>, vector<8x32xf32>
    }
    %c2_i32_16 = arith.constant 2 : i32
    %c0_i32_17 = arith.constant 0 : i32
    %c8_i32 = arith.constant 8 : i32
    %14 = arith.muli %c0_i32_17, %c8_i32 : i32
    %15 = tpu.assume_multiple %14, 8 : i32
    %16 = arith.index_cast %15 : i32 to index
    %c0_18 = arith.constant 0 : index
    %17 = vector.load %arg11[%16, %c0_18] : memref<64x128xf32, #tpu.memory_space<vmem>>, vector<8x128xf32>
    %18 = arith.truncf %11 : vector<8x32xf32> to vector<8x32xbf16>
    %cst_19 = arith.constant dense<0.000000e+00> : vector<8x128xf32>
    %19 = tpu.matmul %18, %1, %cst_19 {dimension_numbers = #tpu.dot_dimension_numbers<[1], [0], [0], [1], [0, 0, 1, 1], [], []>} : vector<8x32xbf16>, vector<32x128xbf16>, vector<8x128xf32> -> vector<8x128xf32>
    %20 = arith.addf %17, %19 : vector<8x128xf32>
    %21 = vector.extract_strided_slice %20 {offsets = [0, 0], sizes = [8, 32], strides = [1, 1]} : vector<8x128xf32> to vector<8x32xf32>
    %22 = arith.negf %21 : vector<8x32xf32>
    %23 = math.exp %22 : vector<8x32xf32>
    %cst_20 = arith.constant 1.000000e+00 : f32
    %24 = vector.broadcast %cst_20 : f32 to vector<8x32xf32>
    %25 = arith.addf %24, %23 : vector<8x32xf32>
    %26 = arith.divf %24, %25 : vector<8x32xf32>
    %27 = vector.extract_strided_slice %20 {offsets = [0, 32], sizes = [8, 32], strides = [1, 1]} : vector<8x128xf32> to vector<8x32xf32>
    %28 = arith.negf %27 : vector<8x32xf32>
    %29 = math.exp %28 : vector<8x32xf32>
    %cst_21 = arith.constant 1.000000e+00 : f32
    %30 = vector.broadcast %cst_21 : f32 to vector<8x32xf32>
    %31 = arith.addf %30, %29 : vector<8x32xf32>
    %32 = arith.divf %30, %31 : vector<8x32xf32>
    %33 = vector.extract_strided_slice %20 {offsets = [0, 64], sizes = [8, 32], strides = [1, 1]} : vector<8x128xf32> to vector<8x32xf32>
    %34 = math.tanh %33 : vector<8x32xf32>
    %35 = vector.extract_strided_slice %20 {offsets = [0, 96], sizes = [8, 32], strides = [1, 1]} : vector<8x128xf32> to vector<8x32xf32>
    %36 = arith.negf %35 : vector<8x32xf32>
    %37 = math.exp %36 : vector<8x32xf32>
    %cst_22 = arith.constant 1.000000e+00 : f32
    %38 = vector.broadcast %cst_22 : f32 to vector<8x32xf32>
    %39 = arith.addf %38, %37 : vector<8x32xf32>
    %40 = arith.divf %38, %39 : vector<8x32xf32>
    %41 = arith.mulf %32, %11 : vector<8x32xf32>
    %42 = arith.mulf %26, %34 : vector<8x32xf32>
    %43 = arith.addf %41, %42 : vector<8x32xf32>
    %44 = math.tanh %43 : vector<8x32xf32>
    %45 = arith.mulf %40, %44 : vector<8x32xf32>
    %c1_i32_23 = arith.constant 1 : i32
    %c8_i32_24 = arith.constant 8 : i32
    %46 = arith.muli %c1_i32_23, %c8_i32_24 : i32
    %47 = tpu.assume_multiple %46, 8 : i32
    %48 = arith.index_cast %47 : i32 to index
    %c0_25 = arith.constant 0 : index
    %49 = vector.load %arg11[%48, %c0_25] : memref<64x128xf32, #tpu.memory_space<vmem>>, vector<8x128xf32>
    %50 = arith.truncf %45 : vector<8x32xf32> to vector<8x32xbf16>
    %cst_26 = arith.constant dense<0.000000e+00> : vector<8x128xf32>
    %51 = tpu.matmul %50, %1, %cst_26 {dimension_numbers = #tpu.dot_dimension_numbers<[1], [0], [0], [1], [0, 0, 1, 1], [], []>} : vector<8x32xbf16>, vector<32x128xbf16>, vector<8x128xf32> -> vector<8x128xf32>
    %52 = arith.addf %49, %51 : vector<8x128xf32>
    %53 = vector.extract_strided_slice %52 {offsets = [0, 0], sizes = [8, 32], strides = [1, 1]} : vector<8x128xf32> to vector<8x32xf32>
    %54 = arith.negf %53 : vector<8x32xf32>
    %55 = math.exp %54 : vector<8x32xf32>
    %cst_27 = arith.constant 1.000000e+00 : f32
    %56 = vector.broadcast %cst_27 : f32 to vector<8x32xf32>
    %57 = arith.addf %56, %55 : vector<8x32xf32>
    %58 = arith.divf %56, %57 : vector<8x32xf32>
    %59 = vector.extract_strided_slice %52 {offsets = [0, 32], sizes = [8, 32], strides = [1, 1]} : vector<8x128xf32> to vector<8x32xf32>
    %60 = arith.negf %59 : vector<8x32xf32>
    %61 = math.exp %60 : vector<8x32xf32>
    %cst_28 = arith.constant 1.000000e+00 : f32
    %62 = vector.broadcast %cst_28 : f32 to vector<8x32xf32>
    %63 = arith.addf %62, %61 : vector<8x32xf32>
    %64 = arith.divf %62, %63 : vector<8x32xf32>
    %65 = vector.extract_strided_slice %52 {offsets = [0, 64], sizes = [8, 32], strides = [1, 1]} : vector<8x128xf32> to vector<8x32xf32>
    %66 = math.tanh %65 : vector<8x32xf32>
    %67 = vector.extract_strided_slice %52 {offsets = [0, 96], sizes = [8, 32], strides = [1, 1]} : vector<8x128xf32> to vector<8x32xf32>
    %68 = arith.negf %67 : vector<8x32xf32>
    %69 = math.exp %68 : vector<8x32xf32>
    %cst_29 = arith.constant 1.000000e+00 : f32
    %70 = vector.broadcast %cst_29 : f32 to vector<8x32xf32>
    %71 = arith.addf %70, %69 : vector<8x32xf32>
    %72 = arith.divf %70, %71 : vector<8x32xf32>
    %73 = arith.mulf %64, %43 : vector<8x32xf32>
    %74 = arith.mulf %58, %66 : vector<8x32xf32>
    %75 = arith.addf %73, %74 : vector<8x32xf32>
    %76 = math.tanh %75 : vector<8x32xf32>
    %77 = arith.mulf %72, %76 : vector<8x32xf32>
    %c2_i32_30 = arith.constant 2 : i32
    %c8_i32_31 = arith.constant 8 : i32
    %78 = arith.muli %c2_i32_30, %c8_i32_31 : i32
    %79 = tpu.assume_multiple %78, 8 : i32
    %80 = arith.index_cast %79 : i32 to index
    %c0_32 = arith.constant 0 : index
    %81 = vector.load %arg11[%80, %c0_32] : memref<64x128xf32, #tpu.memory_space<vmem>>, vector<8x128xf32>
    %82 = arith.truncf %77 : vector<8x32xf32> to vector<8x32xbf16>
    %cst_33 = arith.constant dense<0.000000e+00> : vector<8x128xf32>
    %83 = tpu.matmul %82, %1, %cst_33 {dimension_numbers = #tpu.dot_dimension_numbers<[1], [0], [0], [1], [0, 0, 1, 1], [], []>} : vector<8x32xbf16>, vector<32x128xbf16>, vector<8x128xf32> -> vector<8x128xf32>
    %84 = arith.addf %81, %83 : vector<8x128xf32>
    %85 = vector.extract_strided_slice %84 {offsets = [0, 0], sizes = [8, 32], strides = [1, 1]} : vector<8x128xf32> to vector<8x32xf32>
    %86 = arith.negf %85 : vector<8x32xf32>
    %87 = math.exp %86 : vector<8x32xf32>
    %cst_34 = arith.constant 1.000000e+00 : f32
    %88 = vector.broadcast %cst_34 : f32 to vector<8x32xf32>
    %89 = arith.addf %88, %87 : vector<8x32xf32>
    %90 = arith.divf %88, %89 : vector<8x32xf32>
    %91 = vector.extract_strided_slice %84 {offsets = [0, 32], sizes = [8, 32], strides = [1, 1]} : vector<8x128xf32> to vector<8x32xf32>
    %92 = arith.negf %91 : vector<8x32xf32>
    %93 = math.exp %92 : vector<8x32xf32>
    %cst_35 = arith.constant 1.000000e+00 : f32
    %94 = vector.broadcast %cst_35 : f32 to vector<8x32xf32>
    %95 = arith.addf %94, %93 : vector<8x32xf32>
    %96 = arith.divf %94, %95 : vector<8x32xf32>
    %97 = vector.extract_strided_slice %84 {offsets = [0, 64], sizes = [8, 32], strides = [1, 1]} : vector<8x128xf32> to vector<8x32xf32>
    %98 = math.tanh %97 : vector<8x32xf32>
    %99 = vector.extract_strided_slice %84 {offsets = [0, 96], sizes = [8, 32], strides = [1, 1]} : vector<8x128xf32> to vector<8x32xf32>
    %100 = arith.negf %99 : vector<8x32xf32>
    %101 = math.exp %100 : vector<8x32xf32>
    %cst_36 = arith.constant 1.000000e+00 : f32
    %102 = vector.broadcast %cst_36 : f32 to vector<8x32xf32>
    %103 = arith.addf %102, %101 : vector<8x32xf32>
    %104 = arith.divf %102, %103 : vector<8x32xf32>
    %105 = arith.mulf %96, %75 : vector<8x32xf32>
    %106 = arith.mulf %90, %98 : vector<8x32xf32>
    %107 = arith.addf %105, %106 : vector<8x32xf32>
    %108 = math.tanh %107 : vector<8x32xf32>
    %109 = arith.mulf %104, %108 : vector<8x32xf32>
    %c3_i32 = arith.constant 3 : i32
    %c8_i32_37 = arith.constant 8 : i32
    %110 = arith.muli %c3_i32, %c8_i32_37 : i32
    %111 = tpu.assume_multiple %110, 8 : i32
    %112 = arith.index_cast %111 : i32 to index
    %c0_38 = arith.constant 0 : index
    %113 = vector.load %arg11[%112, %c0_38] : memref<64x128xf32, #tpu.memory_space<vmem>>, vector<8x128xf32>
    %114 = arith.truncf %109 : vector<8x32xf32> to vector<8x32xbf16>
    %cst_39 = arith.constant dense<0.000000e+00> : vector<8x128xf32>
    %115 = tpu.matmul %114, %1, %cst_39 {dimension_numbers = #tpu.dot_dimension_numbers<[1], [0], [0], [1], [0, 0, 1, 1], [], []>} : vector<8x32xbf16>, vector<32x128xbf16>, vector<8x128xf32> -> vector<8x128xf32>
    %116 = arith.addf %113, %115 : vector<8x128xf32>
    %117 = vector.extract_strided_slice %116 {offsets = [0, 0], sizes = [8, 32], strides = [1, 1]} : vector<8x128xf32> to vector<8x32xf32>
    %118 = arith.negf %117 : vector<8x32xf32>
    %119 = math.exp %118 : vector<8x32xf32>
    %cst_40 = arith.constant 1.000000e+00 : f32
    %120 = vector.broadcast %cst_40 : f32 to vector<8x32xf32>
    %121 = arith.addf %120, %119 : vector<8x32xf32>
    %122 = arith.divf %120, %121 : vector<8x32xf32>
    %123 = vector.extract_strided_slice %116 {offsets = [0, 32], sizes = [8, 32], strides = [1, 1]} : vector<8x128xf32> to vector<8x32xf32>
    %124 = arith.negf %123 : vector<8x32xf32>
    %125 = math.exp %124 : vector<8x32xf32>
    %cst_41 = arith.constant 1.000000e+00 : f32
    %126 = vector.broadcast %cst_41 : f32 to vector<8x32xf32>
    %127 = arith.addf %126, %125 : vector<8x32xf32>
    %128 = arith.divf %126, %127 : vector<8x32xf32>
    %129 = vector.extract_strided_slice %116 {offsets = [0, 64], sizes = [8, 32], strides = [1, 1]} : vector<8x128xf32> to vector<8x32xf32>
    %130 = math.tanh %129 : vector<8x32xf32>
    %131 = vector.extract_strided_slice %116 {offsets = [0, 96], sizes = [8, 32], strides = [1, 1]} : vector<8x128xf32> to vector<8x32xf32>
    %132 = arith.negf %131 : vector<8x32xf32>
    %133 = math.exp %132 : vector<8x32xf32>
    %cst_42 = arith.constant 1.000000e+00 : f32
    %134 = vector.broadcast %cst_42 : f32 to vector<8x32xf32>
    %135 = arith.addf %134, %133 : vector<8x32xf32>
    %136 = arith.divf %134, %135 : vector<8x32xf32>
    %137 = arith.mulf %128, %107 : vector<8x32xf32>
    %138 = arith.mulf %122, %130 : vector<8x32xf32>
    %139 = arith.addf %137, %138 : vector<8x32xf32>
    %140 = math.tanh %139 : vector<8x32xf32>
    %141 = arith.mulf %136, %140 : vector<8x32xf32>
    %c4_i32 = arith.constant 4 : i32
    %c8_i32_43 = arith.constant 8 : i32
    %142 = arith.muli %c4_i32, %c8_i32_43 : i32
    %143 = tpu.assume_multiple %142, 8 : i32
    %144 = arith.index_cast %143 : i32 to index
    %c0_44 = arith.constant 0 : index
    %145 = vector.load %arg11[%144, %c0_44] : memref<64x128xf32, #tpu.memory_space<vmem>>, vector<8x128xf32>
    %146 = arith.truncf %141 : vector<8x32xf32> to vector<8x32xbf16>
    %cst_45 = arith.constant dense<0.000000e+00> : vector<8x128xf32>
    %147 = tpu.matmul %146, %1, %cst_45 {dimension_numbers = #tpu.dot_dimension_numbers<[1], [0], [0], [1], [0, 0, 1, 1], [], []>} : vector<8x32xbf16>, vector<32x128xbf16>, vector<8x128xf32> -> vector<8x128xf32>
    %148 = arith.addf %145, %147 : vector<8x128xf32>
    %149 = vector.extract_strided_slice %148 {offsets = [0, 0], sizes = [8, 32], strides = [1, 1]} : vector<8x128xf32> to vector<8x32xf32>
    %150 = arith.negf %149 : vector<8x32xf32>
    %151 = math.exp %150 : vector<8x32xf32>
    %cst_46 = arith.constant 1.000000e+00 : f32
    %152 = vector.broadcast %cst_46 : f32 to vector<8x32xf32>
    %153 = arith.addf %152, %151 : vector<8x32xf32>
    %154 = arith.divf %152, %153 : vector<8x32xf32>
    %155 = vector.extract_strided_slice %148 {offsets = [0, 32], sizes = [8, 32], strides = [1, 1]} : vector<8x128xf32> to vector<8x32xf32>
    %156 = arith.negf %155 : vector<8x32xf32>
    %157 = math.exp %156 : vector<8x32xf32>
    %cst_47 = arith.constant 1.000000e+00 : f32
    %158 = vector.broadcast %cst_47 : f32 to vector<8x32xf32>
    %159 = arith.addf %158, %157 : vector<8x32xf32>
    %160 = arith.divf %158, %159 : vector<8x32xf32>
    %161 = vector.extract_strided_slice %148 {offsets = [0, 64], sizes = [8, 32], strides = [1, 1]} : vector<8x128xf32> to vector<8x32xf32>
    %162 = math.tanh %161 : vector<8x32xf32>
    %163 = vector.extract_strided_slice %148 {offsets = [0, 96], sizes = [8, 32], strides = [1, 1]} : vector<8x128xf32> to vector<8x32xf32>
    %164 = arith.negf %163 : vector<8x32xf32>
    %165 = math.exp %164 : vector<8x32xf32>
    %cst_48 = arith.constant 1.000000e+00 : f32
    %166 = vector.broadcast %cst_48 : f32 to vector<8x32xf32>
    %167 = arith.addf %166, %165 : vector<8x32xf32>
    %168 = arith.divf %166, %167 : vector<8x32xf32>
    %169 = arith.mulf %160, %139 : vector<8x32xf32>
    %170 = arith.mulf %154, %162 : vector<8x32xf32>
    %171 = arith.addf %169, %170 : vector<8x32xf32>
    %172 = math.tanh %171 : vector<8x32xf32>
    %173 = arith.mulf %168, %172 : vector<8x32xf32>
    %c5_i32 = arith.constant 5 : i32
    %c8_i32_49 = arith.constant 8 : i32
    %174 = arith.muli %c5_i32, %c8_i32_49 : i32
    %175 = tpu.assume_multiple %174, 8 : i32
    %176 = arith.index_cast %175 : i32 to index
    %c0_50 = arith.constant 0 : index
    %177 = vector.load %arg11[%176, %c0_50] : memref<64x128xf32, #tpu.memory_space<vmem>>, vector<8x128xf32>
    %178 = arith.truncf %173 : vector<8x32xf32> to vector<8x32xbf16>
    %cst_51 = arith.constant dense<0.000000e+00> : vector<8x128xf32>
    %179 = tpu.matmul %178, %1, %cst_51 {dimension_numbers = #tpu.dot_dimension_numbers<[1], [0], [0], [1], [0, 0, 1, 1], [], []>} : vector<8x32xbf16>, vector<32x128xbf16>, vector<8x128xf32> -> vector<8x128xf32>
    %180 = arith.addf %177, %179 : vector<8x128xf32>
    %181 = vector.extract_strided_slice %180 {offsets = [0, 0], sizes = [8, 32], strides = [1, 1]} : vector<8x128xf32> to vector<8x32xf32>
    %182 = arith.negf %181 : vector<8x32xf32>
    %183 = math.exp %182 : vector<8x32xf32>
    %cst_52 = arith.constant 1.000000e+00 : f32
    %184 = vector.broadcast %cst_52 : f32 to vector<8x32xf32>
    %185 = arith.addf %184, %183 : vector<8x32xf32>
    %186 = arith.divf %184, %185 : vector<8x32xf32>
    %187 = vector.extract_strided_slice %180 {offsets = [0, 32], sizes = [8, 32], strides = [1, 1]} : vector<8x128xf32> to vector<8x32xf32>
    %188 = arith.negf %187 : vector<8x32xf32>
    %189 = math.exp %188 : vector<8x32xf32>
    %cst_53 = arith.constant 1.000000e+00 : f32
    %190 = vector.broadcast %cst_53 : f32 to vector<8x32xf32>
    %191 = arith.addf %190, %189 : vector<8x32xf32>
    %192 = arith.divf %190, %191 : vector<8x32xf32>
    %193 = vector.extract_strided_slice %180 {offsets = [0, 64], sizes = [8, 32], strides = [1, 1]} : vector<8x128xf32> to vector<8x32xf32>
    %194 = math.tanh %193 : vector<8x32xf32>
    %195 = vector.extract_strided_slice %180 {offsets = [0, 96], sizes = [8, 32], strides = [1, 1]} : vector<8x128xf32> to vector<8x32xf32>
    %196 = arith.negf %195 : vector<8x32xf32>
    %197 = math.exp %196 : vector<8x32xf32>
    %cst_54 = arith.constant 1.000000e+00 : f32
    %198 = vector.broadcast %cst_54 : f32 to vector<8x32xf32>
    %199 = arith.addf %198, %197 : vector<8x32xf32>
    %200 = arith.divf %198, %199 : vector<8x32xf32>
    %201 = arith.mulf %192, %171 : vector<8x32xf32>
    %202 = arith.mulf %186, %194 : vector<8x32xf32>
    %203 = arith.addf %201, %202 : vector<8x32xf32>
    %204 = math.tanh %203 : vector<8x32xf32>
    %205 = arith.mulf %200, %204 : vector<8x32xf32>
    %c6_i32 = arith.constant 6 : i32
    %c8_i32_55 = arith.constant 8 : i32
    %206 = arith.muli %c6_i32, %c8_i32_55 : i32
    %207 = tpu.assume_multiple %206, 8 : i32
    %208 = arith.index_cast %207 : i32 to index
    %c0_56 = arith.constant 0 : index
    %209 = vector.load %arg11[%208, %c0_56] : memref<64x128xf32, #tpu.memory_space<vmem>>, vector<8x128xf32>
    %210 = arith.truncf %205 : vector<8x32xf32> to vector<8x32xbf16>
    %cst_57 = arith.constant dense<0.000000e+00> : vector<8x128xf32>
    %211 = tpu.matmul %210, %1, %cst_57 {dimension_numbers = #tpu.dot_dimension_numbers<[1], [0], [0], [1], [0, 0, 1, 1], [], []>} : vector<8x32xbf16>, vector<32x128xbf16>, vector<8x128xf32> -> vector<8x128xf32>
    %212 = arith.addf %209, %211 : vector<8x128xf32>
    %213 = vector.extract_strided_slice %212 {offsets = [0, 0], sizes = [8, 32], strides = [1, 1]} : vector<8x128xf32> to vector<8x32xf32>
    %214 = arith.negf %213 : vector<8x32xf32>
    %215 = math.exp %214 : vector<8x32xf32>
    %cst_58 = arith.constant 1.000000e+00 : f32
    %216 = vector.broadcast %cst_58 : f32 to vector<8x32xf32>
    %217 = arith.addf %216, %215 : vector<8x32xf32>
    %218 = arith.divf %216, %217 : vector<8x32xf32>
    %219 = vector.extract_strided_slice %212 {offsets = [0, 32], sizes = [8, 32], strides = [1, 1]} : vector<8x128xf32> to vector<8x32xf32>
    %220 = arith.negf %219 : vector<8x32xf32>
    %221 = math.exp %220 : vector<8x32xf32>
    %cst_59 = arith.constant 1.000000e+00 : f32
    %222 = vector.broadcast %cst_59 : f32 to vector<8x32xf32>
    %223 = arith.addf %222, %221 : vector<8x32xf32>
    %224 = arith.divf %222, %223 : vector<8x32xf32>
    %225 = vector.extract_strided_slice %212 {offsets = [0, 64], sizes = [8, 32], strides = [1, 1]} : vector<8x128xf32> to vector<8x32xf32>
    %226 = math.tanh %225 : vector<8x32xf32>
    %227 = vector.extract_strided_slice %212 {offsets = [0, 96], sizes = [8, 32], strides = [1, 1]} : vector<8x128xf32> to vector<8x32xf32>
    %228 = arith.negf %227 : vector<8x32xf32>
    %229 = math.exp %228 : vector<8x32xf32>
    %cst_60 = arith.constant 1.000000e+00 : f32
    %230 = vector.broadcast %cst_60 : f32 to vector<8x32xf32>
    %231 = arith.addf %230, %229 : vector<8x32xf32>
    %232 = arith.divf %230, %231 : vector<8x32xf32>
    %233 = arith.mulf %224, %203 : vector<8x32xf32>
    %234 = arith.mulf %218, %226 : vector<8x32xf32>
    %235 = arith.addf %233, %234 : vector<8x32xf32>
    %236 = math.tanh %235 : vector<8x32xf32>
    %237 = arith.mulf %232, %236 : vector<8x32xf32>
    %c7_i32 = arith.constant 7 : i32
    %c8_i32_61 = arith.constant 8 : i32
    %238 = arith.muli %c7_i32, %c8_i32_61 : i32
    %239 = tpu.assume_multiple %238, 8 : i32
    %240 = arith.index_cast %239 : i32 to index
    %c0_62 = arith.constant 0 : index
    %241 = vector.load %arg11[%240, %c0_62] : memref<64x128xf32, #tpu.memory_space<vmem>>, vector<8x128xf32>
    %242 = arith.truncf %237 : vector<8x32xf32> to vector<8x32xbf16>
    %cst_63 = arith.constant dense<0.000000e+00> : vector<8x128xf32>
    %243 = tpu.matmul %242, %1, %cst_63 {dimension_numbers = #tpu.dot_dimension_numbers<[1], [0], [0], [1], [0, 0, 1, 1], [], []>} : vector<8x32xbf16>, vector<32x128xbf16>, vector<8x128xf32> -> vector<8x128xf32>
    %244 = arith.addf %241, %243 : vector<8x128xf32>
    %245 = vector.extract_strided_slice %244 {offsets = [0, 0], sizes = [8, 32], strides = [1, 1]} : vector<8x128xf32> to vector<8x32xf32>
    %246 = arith.negf %245 : vector<8x32xf32>
    %247 = math.exp %246 : vector<8x32xf32>
    %cst_64 = arith.constant 1.000000e+00 : f32
    %248 = vector.broadcast %cst_64 : f32 to vector<8x32xf32>
    %249 = arith.addf %248, %247 : vector<8x32xf32>
    %250 = arith.divf %248, %249 : vector<8x32xf32>
    %251 = vector.extract_strided_slice %244 {offsets = [0, 32], sizes = [8, 32], strides = [1, 1]} : vector<8x128xf32> to vector<8x32xf32>
    %252 = arith.negf %251 : vector<8x32xf32>
    %253 = math.exp %252 : vector<8x32xf32>
    %cst_65 = arith.constant 1.000000e+00 : f32
    %254 = vector.broadcast %cst_65 : f32 to vector<8x32xf32>
    %255 = arith.addf %254, %253 : vector<8x32xf32>
    %256 = arith.divf %254, %255 : vector<8x32xf32>
    %257 = vector.extract_strided_slice %244 {offsets = [0, 64], sizes = [8, 32], strides = [1, 1]} : vector<8x128xf32> to vector<8x32xf32>
    %258 = math.tanh %257 : vector<8x32xf32>
    %259 = vector.extract_strided_slice %244 {offsets = [0, 96], sizes = [8, 32], strides = [1, 1]} : vector<8x128xf32> to vector<8x32xf32>
    %260 = arith.negf %259 : vector<8x32xf32>
    %261 = math.exp %260 : vector<8x32xf32>
    %cst_66 = arith.constant 1.000000e+00 : f32
    %262 = vector.broadcast %cst_66 : f32 to vector<8x32xf32>
    %263 = arith.addf %262, %261 : vector<8x32xf32>
    %264 = arith.divf %262, %263 : vector<8x32xf32>
    %265 = arith.mulf %256, %235 : vector<8x32xf32>
    %266 = arith.mulf %250, %258 : vector<8x32xf32>
    %267 = arith.addf %265, %266 : vector<8x32xf32>
    %268 = math.tanh %267 : vector<8x32xf32>
    %269 = arith.mulf %264, %268 : vector<8x32xf32>
    %c8_i32_67 = arith.constant 8 : i32
    %270 = arith.truncf %269 : vector<8x32xf32> to vector<8x32xbf16>
    %c0_68 = arith.constant 0 : index
    %c0_69 = arith.constant 0 : index
    %271 = vector.load %arg7[%c0_68, %c0_69] : memref<32x1xbf16, #tpu.memory_space<vmem>>, vector<32x1xbf16>
    %cst_70 = arith.constant dense<0.000000e+00> : vector<8x1xf32>
    %272 = tpu.matmul %270, %271, %cst_70 {dimension_numbers = #tpu.dot_dimension_numbers<[1], [0], [0], [1], [0, 0, 1, 1], [], []>} : vector<8x32xbf16>, vector<32x1xbf16>, vector<8x1xf32> -> vector<8x1xf32>
    %c0_71 = arith.constant 0 : index
    %c0_72 = arith.constant 0 : index
    %273 = vector.load %arg8[%c0_71, %c0_72] : memref<1x1xf32, #tpu.memory_space<vmem>>, vector<1x1xf32>
    %274 = vector.broadcast %273 : vector<1x1xf32> to vector<8x1xf32>
    %275 = arith.addf %272, %274 : vector<8x1xf32>
    %c0_73 = arith.constant 0 : index
    %c0_74 = arith.constant 0 : index
    %276 = vector.load %arg9[%c0_73, %c0_74] : memref<8x1xf32, #tpu.memory_space<vmem>>, vector<8x1xf32>
    tpu.vector_store %arg9[%c0_73, %c0_74], %275 {strides = array<i32>} : memref<8x1xf32, #tpu.memory_space<vmem>>, vector<8x1xf32>,
    return
  }
}

</mosaic_0001>

<llo_original>
// kernel: lstm_model_forward.1
$region0: #{lstm_model_forward.1}
  #allocation0 [shape = 'u32[]', space=smem, size = 0x4, offset = 0x4, fixed_abs, tag = 'smem constant byte address 0x4 - core index']
  #allocation1 [shape = 'u32[144,128]{1,0:T(1,128)}', space=vmem, size = 0x12000, scoped, tag = 'internal scratch']
  #allocation2 [shape = 'f32[64,128]{1,0:T(8,128)}', space=vmem, size = 0x8000, scoped, tag = 'scratch operand']
  #allocation3 [shape = 'f32[64,128]{1,0:T(8,128)}', space=vmem, size = 0x8000, scoped, tag = 'scratch operand']
  #allocation4 [shape = 'f32[32,32]{1,0:T(8,128)}', space=vmem, size = 0x4000, scoped, tag = 'scratch operand']
  #allocation5 [shape = 'f32[1,1]{1,0:T(1,128)S(1)}', space=vmem, size = 0x200, scoped, tag = 'scoped memory for lstm_model_forward.1']
  %s0 = inlined_call_operand.vmem [shape: bf16[64,4], index: 0, kind: input, shape index: {}]
  %s1 = inlined_call_operand.vmem [shape: bf16[4,128], index: 1, kind: input, shape index: {}]
  %s2 = inlined_call_operand.vmem [shape: bf16[32,128], index: 2, kind: input, shape index: {}]
  %s3 = inlined_call_operand.vmem [shape: f32[1,128], index: 3, kind: input, shape index: {}]
  %s4 = inlined_call_operand.vmem [shape: bf16[32,128], index: 4, kind: input, shape index: {}]
  %s5 = inlined_call_operand.vmem [shape: bf16[32,128], index: 5, kind: input, shape index: {}]
  %s6 = inlined_call_operand.vmem [shape: f32[1,128], index: 6, kind: input, shape index: {}]
  %s7 = inlined_call_operand.vmem [shape: bf16[32,1], index: 7, kind: input, shape index: {}]
  %s8 = inlined_call_operand.<no memory space> [shape: f32[1,1], index: 8, kind: input, shape index: {}]
  %s9 = inlined_call_operand.vmem [shape: f32[8,1], index: 9, kind: output, shape index: {}]
  %s10 = sld [smem:[#allocation0]]
  $region53: #{lstm_model_forward.1} parent=0
    _
  %s12 = ssub.s32 1, %s10
  %s13 = scalar_select 0, %s12, %s10
  %v14 = vstv %s8
  %15 = vst [vmem:[#allocation5] sm:$0x1] %v14
  // Predicated region
  $region2: #{lstm_model_forward.1} parent=0 // pred_check
    _
  $region3: #{lstm_model_forward.1} parent=0 // pred_check_branch
    %17 = sbr.rel (0) target = $region5
  $region4: #{lstm_model_forward.1} parent=0 // pred_region
    _
  $region5: #{lstm_model_forward.1} parent=0 // pred_fallthru
    _
  // Predicated region
  $region6: #{lstm_model_forward.1} parent=0 // pred_check
    _
  $region7: #{lstm_model_forward.1} parent=0 // pred_check_branch
    %19 = sbr.rel (0) target = $region9
  $region8: #{lstm_model_forward.1} parent=0 // pred_region
    _
  $region9: #{lstm_model_forward.1} parent=0 // pred_fallthru
    _
  // Predicated region
  $region10: #{lstm_model_forward.1} parent=0 // pred_check
    _
  $region11: #{lstm_model_forward.1} parent=0 // pred_check_branch
    %21 = sbr.rel (0) target = $region13
  $region12: #{lstm_model_forward.1} parent=0 // pred_region
    _
  $region13: #{lstm_model_forward.1} parent=0 // pred_fallthru
    _
  // Predicated region
  $region14: #{lstm_model_forward.1} parent=0 // pred_check
    _
  $region15: #{lstm_model_forward.1} parent=0 // pred_check_branch
    %23 = sbr.rel (0) target = $region17
  $region16: #{lstm_model_forward.1} parent=0 // pred_region
    _
  $region17: #{lstm_model_forward.1} parent=0 // pred_fallthru
    _
  // Predicated region
  $region18: #{lstm_model_forward.1} parent=0 // pred_check
    _
  $region19: #{lstm_model_forward.1} parent=0 // pred_check_branch
    %25 = sbr.rel (0) target = $region21
  $region20: #{lstm_model_forward.1} parent=0 // pred_region
    _
  $region21: #{lstm_model_forward.1} parent=0 // pred_fallthru
    _
  // Predicated region
  $region22: #{lstm_model_forward.1} parent=0 // pred_check
    _
  $region23: #{lstm_model_forward.1} parent=0 // pred_check_branch
    %27 = sbr.rel (0) target = $region25
  $region24: #{lstm_model_forward.1} parent=0 // pred_region
    _
  $region25: #{lstm_model_forward.1} parent=0 // pred_fallthru
    _
  // Predicated region
  $region26: #{lstm_model_forward.1} parent=0 // pred_check
    _
  $region27: #{lstm_model_forward.1} parent=0 // pred_check_branch
    %29 = sbr.rel (0) target = $region29
  $region28: #{lstm_model_forward.1} parent=0 // pred_region
    _
  $region29: #{lstm_model_forward.1} parent=0 // pred_fallthru
    _
  // Predicated region
  $region30: #{lstm_model_forward.1} parent=0 // pred_check
    _
  $region31: #{lstm_model_forward.1} parent=0 // pred_check_branch
    %31 = sbr.rel (0) target = $region33
  $region32: #{lstm_model_forward.1} parent=0 // pred_region
    _
  $region33: #{lstm_model_forward.1} parent=0 // pred_fallthru
    _
  // Predicated region
  $region34: #{lstm_model_forward.1} parent=0 // pred_check
    _
  $region35: #{lstm_model_forward.1} parent=0 // pred_check_branch
    %33 = sbr.rel (0) target = $region37
  $region36: #{lstm_model_forward.1} parent=0 // pred_region
    _
  $region37: #{lstm_model_forward.1} parent=0 // pred_fallthru
    _
  %v35 = vld [vmem:[%s2] sm:$0xf]
  %v36 = vld [vmem:[%s2 + $0x4] sm:$0xf]
  %v37 = vld [vmem:[%s2 + $0x8] sm:$0xf]
  %v38 = vld [vmem:[%s2 + $0xc] sm:$0xf]
  %v39 = vld [vmem:[%s5] sm:$0xf]
  %v40 = vld [vmem:[%s5 + $0x4] sm:$0xf]
  %v41 = vld [vmem:[%s5 + $0x8] sm:$0xf]
  %v42 = vld [vmem:[%s5 + $0xc] sm:$0xf]
  %v43 = vld [vmem:[%s4] sm:$0xf]
  %v44 = vld [vmem:[%s4 + $0x4] sm:$0xf]
  %v45 = vld [vmem:[%s4 + $0x8] sm:$0xf]
  %v46 = vld [vmem:[%s4 + $0xc] sm:$0xf]
  %v47 = vld [vmem:[%s6] sm:$0x1]
  %v48 = vld [vmem:[%s0] sm:$0xf]
  %v49 = vld [vmem:[%s0 + $0x4] sm:$0xf]
  %v50 = vld [vmem:[%s0 + $0x8] sm:$0xf]
  %v51 = vld [vmem:[%s0 + $0xc] sm:$0xf]
  %v52 = vld [vmem:[%s0 + $0x10] sm:$0xf]
  %v53 = vld [vmem:[%s0 + $0x14] sm:$0xf]
  %v54 = vld [vmem:[%s0 + $0x18] sm:$0xf]
  %v55 = vld [vmem:[%s0 + $0x1c] sm:$0xf]
  %v56 = vld [vmem:[%s1] sm:$0x3]
  %v57 = vld [vmem:[%s3] sm:$0x1]
  %v59 = vlaneseq
  %v60 = vshrl.u32 %v59, 7
  %v61 = vsub.s32 0, %v60
  %v62 = vrot.slane %v57, %v61
  %v72 = vunpack.c.l.b16 %v48
  %v73 = vunpack.c.l.b16 %v49
  %v74 = vunpack.c.l.b16 %v50
  %v75 = vunpack.c.l.b16 %v51
  %v76 = vunpack.c.l.b16 %v52
  %v77 = vunpack.c.l.b16 %v53
  %v78 = vunpack.c.l.b16 %v54
  %v79 = vunpack.c.l.b16 %v55
  %v80 = vpack.c.b16 %v73, %v72
  %v81 = vpack.c.b16 %v75, %v74
  %v82 = vpack.c.b16 %v77, %v76
  %v83 = vpack.c.b16 %v79, %v78
  %vm84 = vcmask 31744
  %v86 = vsel %vm84, %v80, 0
  %v89 = vsel %vm84, %v81, 0
  %v92 = vsel %vm84, %v82, 0
  %v95 = vsel %vm84, %v83, 0
  %vm97 = vcmask 1041408
  %v99 = vsel %vm97, %v56, 0
  %101 = vmatprep.subr.bf16.mxu0 0
  %102 = vmatpush1.bf16.msra.mxu0 %v99
  %103 = vmatprep.subr.bf16.mxu0 0
  %104 = vmatpush1.bf16.msra.mxu0 0
  %105 = vmatprep.subr.bf16.mxu0 0
  %106 = vmatpush1.bf16.msra.mxu0 0
  %107 = vmatprep.subr.bf16.mxu0 0
  %108 = vmatpush1.bf16.msra.mxu0 0
  %109 = vmatprep.subr.bf16.mxu0 0
  %110 = vmatpush1.bf16.msra.mxu0 0
  %111 = vmatprep.subr.bf16.mxu0 0
  %112 = vmatpush1.bf16.msra.mxu0 0
  %113 = vmatprep.subr.bf16.mxu0 0
  %114 = vmatpush1.bf16.msra.mxu0 0
  %115 = vmatprep.subr.bf16.mxu0 0
  %116 = vmatpush1.bf16.msra.mxu0 0
  %117 = vmatprep.subr.bf16.mxu0 0
  %118 = vmatpush1.bf16.msra.mxu0 0
  %119 = vmatprep.subr.bf16.mxu0 0
  %120 = vmatpush1.bf16.msra.mxu0 0
  %121 = vmatprep.subr.bf16.mxu0 0
  %122 = vmatpush1.bf16.msra.mxu0 0
  %123 = vmatprep.subr.bf16.mxu0 0
  %124 = vmatpush1.bf16.msra.mxu0 0
  %125 = vmatprep.subr.bf16.mxu0 0
  %126 = vmatpush1.bf16.msra.mxu0 0
  %127 = vmatprep.subr.bf16.mxu0 0
  %128 = vmatpush1.bf16.msra.mxu0 0
  %129 = vmatprep.subr.bf16.mxu0 0
  %130 = vmatpush1.bf16.msra.mxu0 0
  %131 = vmatprep.subr.bf16.mxu0 0
  %132 = vmatpush1.bf16.msra.mxu0 0
  %133 = vmatprep.mubr.bf16.mxu0 0
  %134 = vmatmul.mubr.bf16.gmra.mrb[0].mxu0 %v86
  %v135 = vpop.f32.mrb[0].mxu0
  %v136 = vadd.f32 %v62, %v135
  %v137 = vpop.f32.mrb[0].mxu0
  %v138 = vpop.f32.mrb[0].mxu0
  %v139 = vadd.f32 %v62, %v138
  %v140 = vpop.f32.mrb[0].mxu0
  %141 = vmatprep.mubr.bf16.mxu0 0
  %142 = vmatmul.mubr.bf16.gmra.mrb[0].mxu0 %v89
  %v143 = vpop.f32.mrb[0].mxu0
  %v144 = vadd.f32 %v62, %v143
  %v145 = vpop.f32.mrb[0].mxu0
  %v146 = vpop.f32.mrb[0].mxu0
  %v147 = vadd.f32 %v62, %v146
  %v148 = vpop.f32.mrb[0].mxu0
  %149 = vmatprep.mubr.bf16.mxu0 0
  %150 = vmatmul.mubr.bf16.gmra.mrb[0].mxu0 %v92
  %v151 = vpop.f32.mrb[0].mxu0
  %v152 = vadd.f32 %v62, %v151
  %v153 = vpop.f32.mrb[0].mxu0
  %v154 = vpop.f32.mrb[0].mxu0
  %v155 = vadd.f32 %v62, %v154
  %v156 = vpop.f32.mrb[0].mxu0
  %157 = vmatprep.mubr.bf16.mxu0 0
  %158 = vmatmul.mubr.bf16.gmra.mrb[0].mxu0 %v95
  %v159 = vpop.f32.mrb[0].mxu0
  %v160 = vadd.f32 %v62, %v159
  %v161 = vpop.f32.mrb[0].mxu0
  %v162 = vpop.f32.mrb[0].mxu0
  %v163 = vadd.f32 %v62, %v162
  %v164 = vpop.f32.mrb[0].mxu0
  %165 = vdwg.mxu0
  %166 = vst [vmem:[#allocation2] sm:$0xff] %v136
  %167 = vst [vmem:[#allocation2 + $0x8] sm:$0xff] %v139
  %168 = vst [vmem:[#allocation2 + $0x10] sm:$0xff] %v144
  %169 = vst [vmem:[#allocation2 + $0x18] sm:$0xff] %v147
  %170 = vst [vmem:[#allocation2 + $0x20] sm:$0xff] %v152
  %171 = vst [vmem:[#allocation2 + $0x28] sm:$0xff] %v155
  %172 = vst [vmem:[#allocation2 + $0x30] sm:$0xff] %v160
  %173 = vst [vmem:[#allocation2 + $0x38] sm:$0xff] %v163
  loop: start=0, step=1, limit=2
  $region38: #{lstm_model_forward.1} parent=0 // loop_pre_header
    _
  $region39: #{lstm_model_forward.1} parent=0 // loop_header
    %s175 = sphi 0, %s179
    %p176 = scmp.ge.s32.totalorder %s175, 2
    %v180 = vphi 0.0, %v511
    %v181 = vphi 0.0, %v505
  $region40: #{lstm_model_forward.1} parent=0 // loop_header_branch
    %178 = sbr.rel (%p176) target = $region44
  $region41: #{lstm_model_forward.1} parent=0 // loop_body
    %s182 = smul.u32 %s175, 32
    %s183 = scalar_lea.vmem [#allocation2], %s182
    %v184 = vld [vmem:[%s183] sm:$0xff]
    %v185 = vpack.c.bf16 %v180, %v180
    %187 = vrot.lane.b32.xlu0 %v185, 32
    %v188 = vpop.permute.xlu0 %187
    %v193 = vunpack.c.l.b16 %v35
    %v194 = vunpack.c.l.b16 %v36
    %v195 = vunpack.c.l.b16 %v37
    %v196 = vunpack.c.l.b16 %v38
    %v197 = vpack.c.b16 %v194, %v193
    %v198 = vpack.c.b16 %v196, %v195
    %vm201 = vcmask 261120
    %v203 = vsel %vm201, %v188, 0
    %205 = vmatprep.subr.bf16.mxu0 0
    %206 = vmatpush1.bf16.msra.mxu0 %v197
    %207 = vmatprep.subr.bf16.mxu0 0
    %208 = vmatpush1.bf16.msra.mxu0 %v198
    %209 = vmatprep.subr.bf16.mxu0 0
    %210 = vmatpush1.bf16.msra.mxu0 0
    %211 = vmatprep.subr.bf16.mxu0 0
    %212 = vmatpush1.bf16.msra.mxu0 0
    %213 = vmatprep.subr.bf16.mxu0 0
    %214 = vmatpush1.bf16.msra.mxu0 0
    %215 = vmatprep.subr.bf16.mxu0 0
    %216 = vmatpush1.bf16.msra.mxu0 0
    %217 = vmatprep.subr.bf16.mxu0 0
    %218 = vmatpush1.bf16.msra.mxu0 0
    %219 = vmatprep.subr.bf16.mxu0 0
    %220 = vmatpush1.bf16.msra.mxu0 0
    %221 = vmatprep.subr.bf16.mxu0 0
    %222 = vmatpush1.bf16.msra.mxu0 0
    %223 = vmatprep.subr.bf16.mxu0 0
    %224 = vmatpush1.bf16.msra.mxu0 0
    %225 = vmatprep.subr.bf16.mxu0 0
    %226 = vmatpush1.bf16.msra.mxu0 0
    %227 = vmatprep.subr.bf16.mxu0 0
    %228 = vmatpush1.bf16.msra.mxu0 0
    %229 = vmatprep.subr.bf16.mxu0 0
    %230 = vmatpush1.bf16.msra.mxu0 0
    %231 = vmatprep.subr.bf16.mxu0 0
    %232 = vmatpush1.bf16.msra.mxu0 0
    %233 = vmatprep.subr.bf16.mxu0 0
    %234 = vmatpush1.bf16.msra.mxu0 0
    %235 = vmatprep.subr.bf16.mxu0 0
    %236 = vmatpush1.bf16.msra.mxu0 0
    %237 = vmatprep.mubr.bf16.mxu0 0
    %238 = vmatmul.mubr.bf16.gmra.mrb[0].mxu0 %v203
    %v239 = vpop.f32.mrb[0].mxu0
    %v240 = vadd.f32 0.0, %v239
    %v241 = vpop.f32.mrb[0].mxu0
    %v242 = vpop.f32.mrb[0].mxu0
    %v243 = vpop.f32.mrb[0].mxu0
    %244 = vdwg.mxu0
    %v245 = vadd.f32 %v184, %v240
    %v246 = vxor.u32 %v245, 2147483648
    %v247 = vmul.f32 %v246, 1.442695
    %v248 = vpow.pop %v247
    %v249 = vadd.f32 %v248, 1.0
    %v250 = vrcp.pop %v249
    %v251 = vmul.f32 1.0, %v250
    %v252 = vtanh.pop %v245
    %v253 = vmul.f32 %v251, %v181
    %255 = vrot.lane.b32.xlu0 %v252, 64
    %v256 = vpop.permute.xlu0 %255
    %v258 = vmul.f32 %v251, %v256
    %260 = vrot.lane.b32.xlu0 %v258, 32
    %v261 = vpop.permute.xlu0 %260
    %v263 = vadd.f32 %v253, %v261
    %v264 = vtanh.pop %v263
    %266 = vrot.lane.b32.xlu0 %v264, 64
    %v267 = vpop.permute.xlu0 %266
    %v269 = vmul.f32 %v251, %v267
    %271 = vrot.lane.b32.xlu0 %v269, 32
    %v272 = vpop.permute.xlu0 %271
    %274 = vst.msk [vmem:[#allocation4] sm:$0xff] %vm201, %v272
    %s275 = sadd.s32 %s182, 8
    %s276 = scalar_lea.vmem [#allocation2], %s275
    %v277 = vld [vmem:[%s276] sm:$0xff]
    %v278 = vpack.c.bf16 %v269, %v269
    %280 = vrot.lane.b32.xlu0 %v278, 32
    %v281 = vpop.permute.xlu0 %280
    %v283 = vsel %vm201, %v281, 0
    %285 = vmatprep.subr.bf16.mxu0 0
    %286 = vmatpush1.bf16.msra.mxu0 %v197
    %287 = vmatprep.subr.bf16.mxu0 0
    %288 = vmatpush1.bf16.msra.mxu0 %v198
    %289 = vmatprep.subr.bf16.mxu0 0
    %290 = vmatpush1.bf16.msra.mxu0 0
    %291 = vmatprep.subr.bf16.mxu0 0
    %292 = vmatpush1.bf16.msra.mxu0 0
    %293 = vmatprep.subr.bf16.mxu0 0
    %294 = vmatpush1.bf16.msra.mxu0 0
    %295 = vmatprep.subr.bf16.mxu0 0
    %296 = vmatpush1.bf16.msra.mxu0 0
    %297 = vmatprep.subr.bf16.mxu0 0
    %298 = vmatpush1.bf16.msra.mxu0 0
    %299 = vmatprep.subr.bf16.mxu0 0
    %300 = vmatpush1.bf16.msra.mxu0 0
    %301 = vmatprep.subr.bf16.mxu0 0
    %302 = vmatpush1.bf16.msra.mxu0 0
    %303 = vmatprep.subr.bf16.mxu0 0
    %304 = vmatpush1.bf16.msra.mxu0 0
    %305 = vmatprep.subr.bf16.mxu0 0
    %306 = vmatpush1.bf16.msra.mxu0 0
    %307 = vmatprep.subr.bf16.mxu0 0
    %308 = vmatpush1.bf16.msra.mxu0 0
    %309 = vmatprep.subr.bf16.mxu0 0
    %310 = vmatpush1.bf16.msra.mxu0 0
    %311 = vmatprep.subr.bf16.mxu0 0
    %312 = vmatpush1.bf16.msra.mxu0 0
    %313 = vmatprep.subr.bf16.mxu0 0
    %314 = vmatpush1.bf16.msra.mxu0 0
    %315 = vmatprep.subr.bf16.mxu0 0
    %316 = vmatpush1.bf16.msra.mxu0 0
    %317 = vmatprep.mubr.bf16.mxu0 0
    %318 = vmatmul.mubr.bf16.gmra.mrb[0].mxu0 %v283
    %v319 = vpop.f32.mrb[0].mxu0
    %v320 = vadd.f32 0.0, %v319
    %v321 = vpop.f32.mrb[0].mxu0
    %v322 = vpop.f32.mrb[0].mxu0
    %v323 = vpop.f32.mrb[0].mxu0
    %324 = vdwg.mxu0
    %v325 = vadd.f32 %v277, %v320
    %v326 = vxor.u32 %v325, 2147483648
    %v327 = vmul.f32 %v326, 1.442695
    %v328 = vpow.pop %v327
    %v329 = vadd.f32 %v328, 1.0
    %v330 = vrcp.pop %v329
    %v331 = vmul.f32 1.0, %v330
    %v332 = vtanh.pop %v325
    %v333 = vmul.f32 %v331, %v263
    %335 = vrot.lane.b32.xlu0 %v332, 64
    %v336 = vpop.permute.xlu0 %335
    %v338 = vmul.f32 %v331, %v336
    %340 = vrot.lane.b32.xlu0 %v338, 32
    %v341 = vpop.permute.xlu0 %340
    %v343 = vadd.f32 %v333, %v341
    %v344 = vtanh.pop %v343
    %346 = vrot.lane.b32.xlu0 %v344, 64
    %v347 = vpop.permute.xlu0 %346
    %v349 = vmul.f32 %v331, %v347
    %351 = vrot.lane.b32.xlu0 %v349, 32
    %v352 = vpop.permute.xlu0 %351
    %s354 = scalar_lea.vmem [#allocation4], 8
    %355 = vst.msk [vmem:[%s354] sm:$0xff] %vm201, %v352
    %s356 = sadd.s32 %s182, 16
    %s357 = scalar_lea.vmem [#allocation2], %s356
    %v358 = vld [vmem:[%s357] sm:$0xff]
    %v359 = vpack.c.bf16 %v349, %v349
    %361 = vrot.lane.b32.xlu0 %v359, 32
    %v362 = vpop.permute.xlu0 %361
    %v364 = vsel %vm201, %v362, 0
    %366 = vmatprep.subr.bf16.mxu0 0
    %367 = vmatpush1.bf16.msra.mxu0 %v197
    %368 = vmatprep.subr.bf16.mxu0 0
    %369 = vmatpush1.bf16.msra.mxu0 %v198
    %370 = vmatprep.subr.bf16.mxu0 0
    %371 = vmatpush1.bf16.msra.mxu0 0
    %372 = vmatprep.subr.bf16.mxu0 0
    %373 = vmatpush1.bf16.msra.mxu0 0
    %374 = vmatprep.subr.bf16.mxu0 0
    %375 = vmatpush1.bf16.msra.mxu0 0
    %376 = vmatprep.subr.bf16.mxu0 0
    %377 = vmatpush1.bf16.msra.mxu0 0
    %378 = vmatprep.subr.bf16.mxu0 0
    %379 = vmatpush1.bf16.msra.mxu0 0
    %380 = vmatprep.subr.bf16.mxu0 0
    %381 = vmatpush1.bf16.msra.mxu0 0
    %382 = vmatprep.subr.bf16.mxu0 0
    %383 = vmatpush1.bf16.msra.mxu0 0
    %384 = vmatprep.subr.bf16.mxu0 0
    %385 = vmatpush1.bf16.msra.mxu0 0
    %386 = vmatprep.subr.bf16.mxu0 0
    %387 = vmatpush1.bf16.msra.mxu0 0
    %388 = vmatprep.subr.bf16.mxu0 0
    %389 = vmatpush1.bf16.msra.mxu0 0
    %390 = vmatprep.subr.bf16.mxu0 0
    %391 = vmatpush1.bf16.msra.mxu0 0
    %392 = vmatprep.subr.bf16.mxu0 0
    %393 = vmatpush1.bf16.msra.mxu0 0
    %394 = vmatprep.subr.bf16.mxu0 0
    %395 = vmatpush1.bf16.msra.mxu0 0
    %396 = vmatprep.subr.bf16.mxu0 0
    %397 = vmatpush1.bf16.msra.mxu0 0
    %398 = vmatprep.mubr.bf16.mxu0 0
    %399 = vmatmul.mubr.bf16.gmra.mrb[0].mxu0 %v364
    %v400 = vpop.f32.mrb[0].mxu0
    %v401 = vadd.f32 0.0, %v400
    %v402 = vpop.f32.mrb[0].mxu0
    %v403 = vpop.f32.mrb[0].mxu0
    %v404 = vpop.f32.mrb[0].mxu0
    %405 = vdwg.mxu0
    %v406 = vadd.f32 %v358, %v401
    %v407 = vxor.u32 %v406, 2147483648
    %v408 = vmul.f32 %v407, 1.442695
    %v409 = vpow.pop %v408
    %v410 = vadd.f32 %v409, 1.0
    %v411 = vrcp.pop %v410
    %v412 = vmul.f32 1.0, %v411
    %v413 = vtanh.pop %v406
    %v414 = vmul.f32 %v412, %v343
    %416 = vrot.lane.b32.xlu0 %v413, 64
    %v417 = vpop.permute.xlu0 %416
    %v419 = vmul.f32 %v412, %v417
    %421 = vrot.lane.b32.xlu0 %v419, 32
    %v422 = vpop.permute.xlu0 %421
    %v424 = vadd.f32 %v414, %v422
    %v425 = vtanh.pop %v424
    %427 = vrot.lane.b32.xlu0 %v425, 64
    %v428 = vpop.permute.xlu0 %427
    %v430 = vmul.f32 %v412, %v428
    %432 = vrot.lane.b32.xlu0 %v430, 32
    %v433 = vpop.permute.xlu0 %432
    %s435 = scalar_lea.vmem [#allocation4], 16
    %436 = vst.msk [vmem:[%s435] sm:$0xff] %vm201, %v433
    %s437 = sadd.s32 %s182, 24
    %s438 = scalar_lea.vmem [#allocation2], %s437
    %v439 = vld [vmem:[%s438] sm:$0xff]
    %v440 = vpack.c.bf16 %v430, %v430
    %442 = vrot.lane.b32.xlu0 %v440, 32
    %v443 = vpop.permute.xlu0 %442
    %v445 = vsel %vm201, %v443, 0
    %447 = vmatprep.subr.bf16.mxu0 0
    %448 = vmatpush1.bf16.msra.mxu0 %v197
    %449 = vmatprep.subr.bf16.mxu0 0
    %450 = vmatpush1.bf16.msra.mxu0 %v198
    %451 = vmatprep.subr.bf16.mxu0 0
    %452 = vmatpush1.bf16.msra.mxu0 0
    %453 = vmatprep.subr.bf16.mxu0 0
    %454 = vmatpush1.bf16.msra.mxu0 0
    %455 = vmatprep.subr.bf16.mxu0 0
    %456 = vmatpush1.bf16.msra.mxu0 0
    %457 = vmatprep.subr.bf16.mxu0 0
    %458 = vmatpush1.bf16.msra.mxu0 0
    %459 = vmatprep.subr.bf16.mxu0 0
    %460 = vmatpush1.bf16.msra.mxu0 0
    %461 = vmatprep.subr.bf16.mxu0 0
    %462 = vmatpush1.bf16.msra.mxu0 0
    %463 = vmatprep.subr.bf16.mxu0 0
    %464 = vmatpush1.bf16.msra.mxu0 0
    %465 = vmatprep.subr.bf16.mxu0 0
    %466 = vmatpush1.bf16.msra.mxu0 0
    %467 = vmatprep.subr.bf16.mxu0 0
    %468 = vmatpush1.bf16.msra.mxu0 0
    %469 = vmatprep.subr.bf16.mxu0 0
    %470 = vmatpush1.bf16.msra.mxu0 0
    %471 = vmatprep.subr.bf16.mxu0 0
    %472 = vmatpush1.bf16.msra.mxu0 0
    %473 = vmatprep.subr.bf16.mxu0 0
    %474 = vmatpush1.bf16.msra.mxu0 0
    %475 = vmatprep.subr.bf16.mxu0 0
    %476 = vmatpush1.bf16.msra.mxu0 0
    %477 = vmatprep.subr.bf16.mxu0 0
    %478 = vmatpush1.bf16.msra.mxu0 0
    %479 = vmatprep.mubr.bf16.mxu0 0
    %480 = vmatmul.mubr.bf16.gmra.mrb[0].mxu0 %v445
    %v481 = vpop.f32.mrb[0].mxu0
    %v482 = vadd.f32 0.0, %v481
    %v483 = vpop.f32.mrb[0].mxu0
    %v484 = vpop.f32.mrb[0].mxu0
    %v485 = vpop.f32.mrb[0].mxu0
    %486 = vdwg.mxu0
    %v487 = vadd.f32 %v439, %v482
    %v488 = vxor.u32 %v487, 2147483648
    %v489 = vmul.f32 %v488, 1.442695
    %v490 = vpow.pop %v489
    %v491 = vadd.f32 %v490, 1.0
    %v492 = vrcp.pop %v491
    %v493 = vmul.f32 1.0, %v492
    %v494 = vtanh.pop %v487
    %v495 = vmul.f32 %v493, %v424
    %497 = vrot.lane.b32.xlu0 %v494, 64
    %v498 = vpop.permute.xlu0 %497
    %v500 = vmul.f32 %v493, %v498
    %502 = vrot.lane.b32.xlu0 %v500, 32
    %v503 = vpop.permute.xlu0 %502
    %v505 = vadd.f32 %v495, %v503
    %v506 = vtanh.pop %v505
    %508 = vrot.lane.b32.xlu0 %v506, 64
    %v509 = vpop.permute.xlu0 %508
    %v511 = vmul.f32 %v493, %v509
    %513 = vrot.lane.b32.xlu0 %v511, 32
    %v514 = vpop.permute.xlu0 %513
    %s516 = scalar_lea.vmem [#allocation4], 24
    %517 = vst.msk [vmem:[%s516] sm:$0xff] %vm201, %v514
    %v518 = vld [vmem:[#allocation4] sm:$0xff]
    %v519 = vld [vmem:[#allocation4 + $0x8] sm:$0xff]
    %v520 = vld [vmem:[#allocation4 + $0x10] sm:$0xff]
    %v521 = vld [vmem:[#allocation4 + $0x18] sm:$0xff]
    %v522 = vpack.c.bf16 %v519, %v518
    %v523 = vpack.c.bf16 %v521, %v520
    %v525 = vlaneseq
    %v526 = vshrl.u32 %v525, 7
    %v527 = vsub.s32 0, %v526
    %v528 = vrot.slane %v47, %v527
    %v534 = vunpack.c.l.b16 %v43
    %v535 = vunpack.c.l.b16 %v44
    %v536 = vunpack.c.l.b16 %v45
    %v537 = vunpack.c.l.b16 %v46
    %v538 = vpack.c.b16 %v535, %v534
    %v539 = vpack.c.b16 %v537, %v536
    %v543 = vsel %vm201, %v522, 0
    %v546 = vsel %vm201, %v523, 0
    %548 = vmatprep.subr.bf16.mxu0 0
    %549 = vmatpush1.bf16.msra.mxu0 %v538
    %550 = vmatprep.subr.bf16.mxu0 0
    %551 = vmatpush1.bf16.msra.mxu0 %v539
    %552 = vmatprep.subr.bf16.mxu0 0
    %553 = vmatpush1.bf16.msra.mxu0 0
    %554 = vmatprep.subr.bf16.mxu0 0
    %555 = vmatpush1.bf16.msra.mxu0 0
    %556 = vmatprep.subr.bf16.mxu0 0
    %557 = vmatpush1.bf16.msra.mxu0 0
    %558 = vmatprep.subr.bf16.mxu0 0
    %559 = vmatpush1.bf16.msra.mxu0 0
    %560 = vmatprep.subr.bf16.mxu0 0
    %561 = vmatpush1.bf16.msra.mxu0 0
    %562 = vmatprep.subr.bf16.mxu0 0
    %563 = vmatpush1.bf16.msra.mxu0 0
    %564 = vmatprep.subr.bf16.mxu0 0
    %565 = vmatpush1.bf16.msra.mxu0 0
    %566 = vmatprep.subr.bf16.mxu0 0
    %567 = vmatpush1.bf16.msra.mxu0 0
    %568 = vmatprep.subr.bf16.mxu0 0
    %569 = vmatpush1.bf16.msra.mxu0 0
    %570 = vmatprep.subr.bf16.mxu0 0
    %571 = vmatpush1.bf16.msra.mxu0 0
    %572 = vmatprep.subr.bf16.mxu0 0
    %573 = vmatpush1.bf16.msra.mxu0 0
    %574 = vmatprep.subr.bf16.mxu0 0
    %575 = vmatpush1.bf16.msra.mxu0 0
    %576 = vmatprep.subr.bf16.mxu0 0
    %577 = vmatpush1.bf16.msra.mxu0 0
    %578 = vmatprep.subr.bf16.mxu0 0
    %579 = vmatpush1.bf16.msra.mxu0 0
    %580 = vmatprep.mubr.bf16.mxu0 0
    %581 = vmatmul.mubr.bf16.gmra.mrb[0].mxu0 %v543
    %v582 = vpop.f32.mrb[0].mxu0
    %v583 = vadd.f32 %v528, %v582
    %v584 = vpop.f32.mrb[0].mxu0
    %v585 = vpop.f32.mrb[0].mxu0
    %v586 = vadd.f32 %v528, %v585
    %v587 = vpop.f32.mrb[0].mxu0
    %588 = vmatprep.mubr.bf16.mxu0 0
    %589 = vmatmul.mubr.bf16.gmra.mrb[0].mxu0 %v546
    %v590 = vpop.f32.mrb[0].mxu0
    %v591 = vadd.f32 %v528, %v590
    %v592 = vpop.f32.mrb[0].mxu0
    %v593 = vpop.f32.mrb[0].mxu0
    %v594 = vadd.f32 %v528, %v593
    %v595 = vpop.f32.mrb[0].mxu0
    %596 = vdwg.mxu0
    %s597 = scalar_lea.vmem [#allocation3], %s182
    %598 = vst [vmem:[%s597] sm:$0xff] %v583
    %599 = vst [vmem:[%s597 + $0x8] sm:$0xff] %v586
    %600 = vst [vmem:[%s597 + $0x10] sm:$0xff] %v591
    %601 = vst [vmem:[%s597 + $0x18] sm:$0xff] %v594
  $region42: #{lstm_model_forward.1} parent=0 // loop_footer
    %s179 = sadd.s32 1, %s175
  $region43: #{lstm_model_forward.1} parent=0 // loop_footer_branch
    %174 = sbr.rel target = $region39
  $region44: #{lstm_model_forward.1} parent=0 // loop_exit
    _
  %v602 = vld [vmem:[#allocation3] sm:$0xff]
  %v607 = vunpack.c.l.b16 %v39
  %v608 = vunpack.c.l.b16 %v40
  %v609 = vunpack.c.l.b16 %v41
  %v610 = vunpack.c.l.b16 %v42
  %v611 = vpack.c.b16 %v608, %v607
  %v612 = vpack.c.b16 %v610, %v609
  %vm615 = vcmask 261120
  %v617 = vsel %vm615, 0, 0
  %619 = vmatprep.subr.bf16.mxu0 0
  %620 = vmatpush1.bf16.msra.mxu0 %v611
  %621 = vmatprep.subr.bf16.mxu0 0
  %622 = vmatpush1.bf16.msra.mxu0 %v612
  %623 = vmatprep.subr.bf16.mxu0 0
  %624 = vmatpush1.bf16.msra.mxu0 0
  %625 = vmatprep.subr.bf16.mxu0 0
  %626 = vmatpush1.bf16.msra.mxu0 0
  %627 = vmatprep.subr.bf16.mxu0 0
  %628 = vmatpush1.bf16.msra.mxu0 0
  %629 = vmatprep.subr.bf16.mxu0 0
  %630 = vmatpush1.bf16.msra.mxu0 0
  %631 = vmatprep.subr.bf16.mxu0 0
  %632 = vmatpush1.bf16.msra.mxu0 0
  %633 = vmatprep.subr.bf16.mxu0 0
  %634 = vmatpush1.bf16.msra.mxu0 0
  %635 = vmatprep.subr.bf16.mxu0 0
  %636 = vmatpush1.bf16.msra.mxu0 0
  %637 = vmatprep.subr.bf16.mxu0 0
  %638 = vmatpush1.bf16.msra.mxu0 0
  %639 = vmatprep.subr.bf16.mxu0 0
  %640 = vmatpush1.bf16.msra.mxu0 0
  %641 = vmatprep.subr.bf16.mxu0 0
  %642 = vmatpush1.bf16.msra.mxu0 0
  %643 = vmatprep.subr.bf16.mxu0 0
  %644 = vmatpush1.bf16.msra.mxu0 0
  %645 = vmatprep.subr.bf16.mxu0 0
  %646 = vmatpush1.bf16.msra.mxu0 0
  %647 = vmatprep.subr.bf16.mxu0 0
  %648 = vmatpush1.bf16.msra.mxu0 0
  %649 = vmatprep.subr.bf16.mxu0 0
  %650 = vmatpush1.bf16.msra.mxu0 0
  %651 = vmatprep.mubr.bf16.mxu0 0
  %652 = vmatmul.mubr.bf16.gmra.mrb[0].mxu0 %v617
  %v653 = vpop.f32.mrb[0].mxu0
  %v654 = vadd.f32 0.0, %v653
  %v655 = vpop.f32.mrb[0].mxu0
  %v656 = vpop.f32.mrb[0].mxu0
  %v657 = vpop.f32.mrb[0].mxu0
  %658 = vdwg.mxu0
  %v659 = vadd.f32 %v602, %v654
  %v660 = vxor.u32 %v659, 2147483648
  %v661 = vmul.f32 %v660, 1.442695
  %v662 = vpow.pop %v661
  %v663 = vadd.f32 %v662, 1.0
  %v664 = vrcp.pop %v663
  %v665 = vmul.f32 1.0, %v664
  %v666 = vtanh.pop %v659
  %v667 = vmul.f32 %v665, 0.0
  %669 = vrot.lane.b32.xlu0 %v666, 64
  %v670 = vpop.permute.xlu0 %669
  %v672 = vmul.f32 %v665, %v670
  %674 = vrot.lane.b32.xlu0 %v672, 32
  %v675 = vpop.permute.xlu0 %674
  %v677 = vadd.f32 %v667, %v675
  %v678 = vtanh.pop %v677
  %680 = vrot.lane.b32.xlu0 %v678, 64
  %v681 = vpop.permute.xlu0 %680
  %v683 = vmul.f32 %v665, %v681
  %s684 = scalar_lea.vmem [#allocation3], 8
  %v685 = vld [vmem:[%s684] sm:$0xff]
  %v686 = vpack.c.bf16 %v683, %v683
  %688 = vrot.lane.b32.xlu0 %v686, 32
  %v689 = vpop.permute.xlu0 %688
  %v691 = vsel %vm615, %v689, 0
  %693 = vmatprep.subr.bf16.mxu0 0
  %694 = vmatpush1.bf16.msra.mxu0 %v611
  %695 = vmatprep.subr.bf16.mxu0 0
  %696 = vmatpush1.bf16.msra.mxu0 %v612
  %697 = vmatprep.subr.bf16.mxu0 0
  %698 = vmatpush1.bf16.msra.mxu0 0
  %699 = vmatprep.subr.bf16.mxu0 0
  %700 = vmatpush1.bf16.msra.mxu0 0
  %701 = vmatprep.subr.bf16.mxu0 0
  %702 = vmatpush1.bf16.msra.mxu0 0
  %703 = vmatprep.subr.bf16.mxu0 0
  %704 = vmatpush1.bf16.msra.mxu0 0
  %705 = vmatprep.subr.bf16.mxu0 0
  %706 = vmatpush1.bf16.msra.mxu0 0
  %707 = vmatprep.subr.bf16.mxu0 0
  %708 = vmatpush1.bf16.msra.mxu0 0
  %709 = vmatprep.subr.bf16.mxu0 0
  %710 = vmatpush1.bf16.msra.mxu0 0
  %711 = vmatprep.subr.bf16.mxu0 0
  %712 = vmatpush1.bf16.msra.mxu0 0
  %713 = vmatprep.subr.bf16.mxu0 0
  %714 = vmatpush1.bf16.msra.mxu0 0
  %715 = vmatprep.subr.bf16.mxu0 0
  %716 = vmatpush1.bf16.msra.mxu0 0
  %717 = vmatprep.subr.bf16.mxu0 0
  %718 = vmatpush1.bf16.msra.mxu0 0
  %719 = vmatprep.subr.bf16.mxu0 0
  %720 = vmatpush1.bf16.msra.mxu0 0
  %721 = vmatprep.subr.bf16.mxu0 0
  %722 = vmatpush1.bf16.msra.mxu0 0
  %723 = vmatprep.subr.bf16.mxu0 0
  %724 = vmatpush1.bf16.msra.mxu0 0
  %725 = vmatprep.mubr.bf16.mxu0 0
  %726 = vmatmul.mubr.bf16.gmra.mrb[0].mxu0 %v691
  %v727 = vpop.f32.mrb[0].mxu0
  %v728 = vadd.f32 0.0, %v727
  %v729 = vpop.f32.mrb[0].mxu0
  %v730 = vpop.f32.mrb[0].mxu0
  %v731 = vpop.f32.mrb[0].mxu0
  %732 = vdwg.mxu0
  %v733 = vadd.f32 %v685, %v728
  %v734 = vxor.u32 %v733, 2147483648
  %v735 = vmul.f32 %v734, 1.442695
  %v736 = vpow.pop %v735
  %v737 = vadd.f32 %v736, 1.0
  %v738 = vrcp.pop %v737
  %v739 = vmul.f32 1.0, %v738
  %v740 = vtanh.pop %v733
  %v741 = vmul.f32 %v739, %v677
  %743 = vrot.lane.b32.xlu0 %v740, 64
  %v744 = vpop.permute.xlu0 %743
  %v746 = vmul.f32 %v739, %v744
  %748 = vrot.lane.b32.xlu0 %v746, 32
  %v749 = vpop.permute.xlu0 %748
  %v751 = vadd.f32 %v741, %v749
  %v752 = vtanh.pop %v751
  %754 = vrot.lane.b32.xlu0 %v752, 64
  %v755 = vpop.permute.xlu0 %754
  %v757 = vmul.f32 %v739, %v755
  %s758 = scalar_lea.vmem [#allocation3], 16
  %v759 = vld [vmem:[%s758] sm:$0xff]
  %v760 = vpack.c.bf16 %v757, %v757
  %762 = vrot.lane.b32.xlu0 %v760, 32
  %v763 = vpop.permute.xlu0 %762
  %v765 = vsel %vm615, %v763, 0
  %767 = vmatprep.subr.bf16.mxu0 0
  %768 = vmatpush1.bf16.msra.mxu0 %v611
  %769 = vmatprep.subr.bf16.mxu0 0
  %770 = vmatpush1.bf16.msra.mxu0 %v612
  %771 = vmatprep.subr.bf16.mxu0 0
  %772 = vmatpush1.bf16.msra.mxu0 0
  %773 = vmatprep.subr.bf16.mxu0 0
  %774 = vmatpush1.bf16.msra.mxu0 0
  %775 = vmatprep.subr.bf16.mxu0 0
  %776 = vmatpush1.bf16.msra.mxu0 0
  %777 = vmatprep.subr.bf16.mxu0 0
  %778 = vmatpush1.bf16.msra.mxu0 0
  %779 = vmatprep.subr.bf16.mxu0 0
  %780 = vmatpush1.bf16.msra.mxu0 0
  %781 = vmatprep.subr.bf16.mxu0 0
  %782 = vmatpush1.bf16.msra.mxu0 0
  %783 = vmatprep.subr.bf16.mxu0 0
  %784 = vmatpush1.bf16.msra.mxu0 0
  %785 = vmatprep.subr.bf16.mxu0 0
  %786 = vmatpush1.bf16.msra.mxu0 0
  %787 = vmatprep.subr.bf16.mxu0 0
  %788 = vmatpush1.bf16.msra.mxu0 0
  %789 = vmatprep.subr.bf16.mxu0 0
  %790 = vmatpush1.bf16.msra.mxu0 0
  %791 = vmatprep.subr.bf16.mxu0 0
  %792 = vmatpush1.bf16.msra.mxu0 0
  %793 = vmatprep.subr.bf16.mxu0 0
  %794 = vmatpush1.bf16.msra.mxu0 0
  %795 = vmatprep.subr.bf16.mxu0 0
  %796 = vmatpush1.bf16.msra.mxu0 0
  %797 = vmatprep.subr.bf16.mxu0 0
  %798 = vmatpush1.bf16.msra.mxu0 0
  %799 = vmatprep.mubr.bf16.mxu0 0
  %800 = vmatmul.mubr.bf16.gmra.mrb[0].mxu0 %v765
  %v801 = vpop.f32.mrb[0].mxu0
  %v802 = vadd.f32 0.0, %v801
  %v803 = vpop.f32.mrb[0].mxu0
  %v804 = vpop.f32.mrb[0].mxu0
  %v805 = vpop.f32.mrb[0].mxu0
  %806 = vdwg.mxu0
  %v807 = vadd.f32 %v759, %v802
  %v808 = vxor.u32 %v807, 2147483648
  %v809 = vmul.f32 %v808, 1.442695
  %v810 = vpow.pop %v809
  %v811 = vadd.f32 %v810, 1.0
  %v812 = vrcp.pop %v811
  %v813 = vmul.f32 1.0, %v812
  %v814 = vtanh.pop %v807
  %v815 = vmul.f32 %v813, %v751
  %817 = vrot.lane.b32.xlu0 %v814, 64
  %v818 = vpop.permute.xlu0 %817
  %v820 = vmul.f32 %v813, %v818
  %822 = vrot.lane.b32.xlu0 %v820, 32
  %v823 = vpop.permute.xlu0 %822
  %v825 = vadd.f32 %v815, %v823
  %v826 = vtanh.pop %v825
  %828 = vrot.lane.b32.xlu0 %v826, 64
  %v829 = vpop.permute.xlu0 %828
  %v831 = vmul.f32 %v813, %v829
  %s832 = scalar_lea.vmem [#allocation3], 24
  %v833 = vld [vmem:[%s832] sm:$0xff]
  %v834 = vpack.c.bf16 %v831, %v831
  %836 = vrot.lane.b32.xlu0 %v834, 32
  %v837 = vpop.permute.xlu0 %836
  %v839 = vsel %vm615, %v837, 0
  %841 = vmatprep.subr.bf16.mxu0 0
  %842 = vmatpush1.bf16.msra.mxu0 %v611
  %843 = vmatprep.subr.bf16.mxu0 0
  %844 = vmatpush1.bf16.msra.mxu0 %v612
  %845 = vmatprep.subr.bf16.mxu0 0
  %846 = vmatpush1.bf16.msra.mxu0 0
  %847 = vmatprep.subr.bf16.mxu0 0
  %848 = vmatpush1.bf16.msra.mxu0 0
  %849 = vmatprep.subr.bf16.mxu0 0
  %850 = vmatpush1.bf16.msra.mxu0 0
  %851 = vmatprep.subr.bf16.mxu0 0
  %852 = vmatpush1.bf16.msra.mxu0 0
  %853 = vmatprep.subr.bf16.mxu0 0
  %854 = vmatpush1.bf16.msra.mxu0 0
  %855 = vmatprep.subr.bf16.mxu0 0
  %856 = vmatpush1.bf16.msra.mxu0 0
  %857 = vmatprep.subr.bf16.mxu0 0
  %858 = vmatpush1.bf16.msra.mxu0 0
  %859 = vmatprep.subr.bf16.mxu0 0
  %860 = vmatpush1.bf16.msra.mxu0 0
  %861 = vmatprep.subr.bf16.mxu0 0
  %862 = vmatpush1.bf16.msra.mxu0 0
  %863 = vmatprep.subr.bf16.mxu0 0
  %864 = vmatpush1.bf16.msra.mxu0 0
  %865 = vmatprep.subr.bf16.mxu0 0
  %866 = vmatpush1.bf16.msra.mxu0 0
  %867 = vmatprep.subr.bf16.mxu0 0
  %868 = vmatpush1.bf16.msra.mxu0 0
  %869 = vmatprep.subr.bf16.mxu0 0
  %870 = vmatpush1.bf16.msra.mxu0 0
  %871 = vmatprep.subr.bf16.mxu0 0
  %872 = vmatpush1.bf16.msra.mxu0 0
  %873 = vmatprep.mubr.bf16.mxu0 0
  %874 = vmatmul.mubr.bf16.gmra.mrb[0].mxu0 %v839
  %v875 = vpop.f32.mrb[0].mxu0
  %v876 = vadd.f32 0.0, %v875
  %v877 = vpop.f32.mrb[0].mxu0
  %v878 = vpop.f32.mrb[0].mxu0
  %v879 = vpop.f32.mrb[0].mxu0
  %880 = vdwg.mxu0
  %v881 = vadd.f32 %v833, %v876
  %v882 = vxor.u32 %v881, 2147483648
  %v883 = vmul.f32 %v882, 1.442695
  %v884 = vpow.pop %v883
  %v885 = vadd.f32 %v884, 1.0
  %v886 = vrcp.pop %v885
  %v887 = vmul.f32 1.0, %v886
  %v888 = vtanh.pop %v881
  %v889 = vmul.f32 %v887, %v825
  %891 = vrot.lane.b32.xlu0 %v888, 64
  %v892 = vpop.permute.xlu0 %891
  %v894 = vmul.f32 %v887, %v892
  %896 = vrot.lane.b32.xlu0 %v894, 32
  %v897 = vpop.permute.xlu0 %896
  %v899 = vadd.f32 %v889, %v897
  %v900 = vtanh.pop %v899
  %902 = vrot.lane.b32.xlu0 %v900, 64
  %v903 = vpop.permute.xlu0 %902
  %v905 = vmul.f32 %v887, %v903
  %s906 = scalar_lea.vmem [#allocation3], 32
  %v907 = vld [vmem:[%s906] sm:$0xff]
  %v908 = vpack.c.bf16 %v905, %v905
  %910 = vrot.lane.b32.xlu0 %v908, 32
  %v911 = vpop.permute.xlu0 %910
  %v913 = vsel %vm615, %v911, 0
  %915 = vmatprep.subr.bf16.mxu0 0
  %916 = vmatpush1.bf16.msra.mxu0 %v611
  %917 = vmatprep.subr.bf16.mxu0 0
  %918 = vmatpush1.bf16.msra.mxu0 %v612
  %919 = vmatprep.subr.bf16.mxu0 0
  %920 = vmatpush1.bf16.msra.mxu0 0
  %921 = vmatprep.subr.bf16.mxu0 0
  %922 = vmatpush1.bf16.msra.mxu0 0
  %923 = vmatprep.subr.bf16.mxu0 0
  %924 = vmatpush1.bf16.msra.mxu0 0
  %925 = vmatprep.subr.bf16.mxu0 0
  %926 = vmatpush1.bf16.msra.mxu0 0
  %927 = vmatprep.subr.bf16.mxu0 0
  %928 = vmatpush1.bf16.msra.mxu0 0
  %929 = vmatprep.subr.bf16.mxu0 0
  %930 = vmatpush1.bf16.msra.mxu0 0
  %931 = vmatprep.subr.bf16.mxu0 0
  %932 = vmatpush1.bf16.msra.mxu0 0
  %933 = vmatprep.subr.bf16.mxu0 0
  %934 = vmatpush1.bf16.msra.mxu0 0
  %935 = vmatprep.subr.bf16.mxu0 0
  %936 = vmatpush1.bf16.msra.mxu0 0
  %937 = vmatprep.subr.bf16.mxu0 0
  %938 = vmatpush1.bf16.msra.mxu0 0
  %939 = vmatprep.subr.bf16.mxu0 0
  %940 = vmatpush1.bf16.msra.mxu0 0
  %941 = vmatprep.subr.bf16.mxu0 0
  %942 = vmatpush1.bf16.msra.mxu0 0
  %943 = vmatprep.subr.bf16.mxu0 0
  %944 = vmatpush1.bf16.msra.mxu0 0
  %945 = vmatprep.subr.bf16.mxu0 0
  %946 = vmatpush1.bf16.msra.mxu0 0
  %947 = vmatprep.mubr.bf16.mxu0 0
  %948 = vmatmul.mubr.bf16.gmra.mrb[0].mxu0 %v913
  %v949 = vpop.f32.mrb[0].mxu0
  %v950 = vadd.f32 0.0, %v949
  %v951 = vpop.f32.mrb[0].mxu0
  %v952 = vpop.f32.mrb[0].mxu0
  %v953 = vpop.f32.mrb[0].mxu0
  %954 = vdwg.mxu0
  %v955 = vadd.f32 %v907, %v950
  %v956 = vxor.u32 %v955, 2147483648
  %v957 = vmul.f32 %v956, 1.442695
  %v958 = vpow.pop %v957
  %v959 = vadd.f32 %v958, 1.0
  %v960 = vrcp.pop %v959
  %v961 = vmul.f32 1.0, %v960
  %v962 = vtanh.pop %v955
  %v963 = vmul.f32 %v961, %v899
  %965 = vrot.lane.b32.xlu0 %v962, 64
  %v966 = vpop.permute.xlu0 %965
  %v968 = vmul.f32 %v961, %v966
  %970 = vrot.lane.b32.xlu0 %v968, 32
  %v971 = vpop.permute.xlu0 %970
  %v973 = vadd.f32 %v963, %v971
  %v974 = vtanh.pop %v973
  %976 = vrot.lane.b32.xlu0 %v974, 64
  %v977 = vpop.permute.xlu0 %976
  %v979 = vmul.f32 %v961, %v977
  %s980 = scalar_lea.vmem [#allocation3], 40
  %v981 = vld [vmem:[%s980] sm:$0xff]
  %v982 = vpack.c.bf16 %v979, %v979
  %984 = vrot.lane.b32.xlu0 %v982, 32
  %v985 = vpop.permute.xlu0 %984
  %v987 = vsel %vm615, %v985, 0
  %989 = vmatprep.subr.bf16.mxu0 0
  %990 = vmatpush1.bf16.msra.mxu0 %v611
  %991 = vmatprep.subr.bf16.mxu0 0
  %992 = vmatpush1.bf16.msra.mxu0 %v612
  %993 = vmatprep.subr.bf16.mxu0 0
  %994 = vmatpush1.bf16.msra.mxu0 0
  %995 = vmatprep.subr.bf16.mxu0 0
  %996 = vmatpush1.bf16.msra.mxu0 0
  %997 = vmatprep.subr.bf16.mxu0 0
  %998 = vmatpush1.bf16.msra.mxu0 0
  %999 = vmatprep.subr.bf16.mxu0 0
  %1000 = vmatpush1.bf16.msra.mxu0 0
  %1001 = vmatprep.subr.bf16.mxu0 0
  %1002 = vmatpush1.bf16.msra.mxu0 0
  %1003 = vmatprep.subr.bf16.mxu0 0
  %1004 = vmatpush1.bf16.msra.mxu0 0
  %1005 = vmatprep.subr.bf16.mxu0 0
  %1006 = vmatpush1.bf16.msra.mxu0 0
  %1007 = vmatprep.subr.bf16.mxu0 0
  %1008 = vmatpush1.bf16.msra.mxu0 0
  %1009 = vmatprep.subr.bf16.mxu0 0
  %1010 = vmatpush1.bf16.msra.mxu0 0
  %1011 = vmatprep.subr.bf16.mxu0 0
  %1012 = vmatpush1.bf16.msra.mxu0 0
  %1013 = vmatprep.subr.bf16.mxu0 0
  %1014 = vmatpush1.bf16.msra.mxu0 0
  %1015 = vmatprep.subr.bf16.mxu0 0
  %1016 = vmatpush1.bf16.msra.mxu0 0
  %1017 = vmatprep.subr.bf16.mxu0 0
  %1018 = vmatpush1.bf16.msra.mxu0 0
  %1019 = vmatprep.subr.bf16.mxu0 0
  %1020 = vmatpush1.bf16.msra.mxu0 0
  %1021 = vmatprep.mubr.bf16.mxu0 0
  %1022 = vmatmul.mubr.bf16.gmra.mrb[0].mxu0 %v987
  %v1023 = vpop.f32.mrb[0].mxu0
  %v1024 = vadd.f32 0.0, %v1023
  %v1025 = vpop.f32.mrb[0].mxu0
  %v1026 = vpop.f32.mrb[0].mxu0
  %v1027 = vpop.f32.mrb[0].mxu0
  %1028 = vdwg.mxu0
  %v1029 = vadd.f32 %v981, %v1024
  %v1030 = vxor.u32 %v1029, 2147483648
  %v1031 = vmul.f32 %v1030, 1.442695
  %v1032 = vpow.pop %v1031
  %v1033 = vadd.f32 %v1032, 1.0
  %v1034 = vrcp.pop %v1033
  %v1035 = vmul.f32 1.0, %v1034
  %v1036 = vtanh.pop %v1029
  %v1037 = vmul.f32 %v1035, %v973
  %1039 = vrot.lane.b32.xlu0 %v1036, 64
  %v1040 = vpop.permute.xlu0 %1039
  %v1042 = vmul.f32 %v1035, %v1040
  %1044 = vrot.lane.b32.xlu0 %v1042, 32
  %v1045 = vpop.permute.xlu0 %1044
  %v1047 = vadd.f32 %v1037, %v1045
  %v1048 = vtanh.pop %v1047
  %1050 = vrot.lane.b32.xlu0 %v1048, 64
  %v1051 = vpop.permute.xlu0 %1050
  %v1053 = vmul.f32 %v1035, %v1051
  %s1054 = scalar_lea.vmem [#allocation3], 48
  %v1055 = vld [vmem:[%s1054] sm:$0xff]
  %v1056 = vpack.c.bf16 %v1053, %v1053
  %1058 = vrot.lane.b32.xlu0 %v1056, 32
  %v1059 = vpop.permute.xlu0 %1058
  %v1061 = vsel %vm615, %v1059, 0
  %1063 = vmatprep.subr.bf16.mxu0 0
  %1064 = vmatpush1.bf16.msra.mxu0 %v611
  %1065 = vmatprep.subr.bf16.mxu0 0
  %1066 = vmatpush1.bf16.msra.mxu0 %v612
  %1067 = vmatprep.subr.bf16.mxu0 0
  %1068 = vmatpush1.bf16.msra.mxu0 0
  %1069 = vmatprep.subr.bf16.mxu0 0
  %1070 = vmatpush1.bf16.msra.mxu0 0
  %1071 = vmatprep.subr.bf16.mxu0 0
  %1072 = vmatpush1.bf16.msra.mxu0 0
  %1073 = vmatprep.subr.bf16.mxu0 0
  %1074 = vmatpush1.bf16.msra.mxu0 0
  %1075 = vmatprep.subr.bf16.mxu0 0
  %1076 = vmatpush1.bf16.msra.mxu0 0
  %1077 = vmatprep.subr.bf16.mxu0 0
  %1078 = vmatpush1.bf16.msra.mxu0 0
  %1079 = vmatprep.subr.bf16.mxu0 0
  %1080 = vmatpush1.bf16.msra.mxu0 0
  %1081 = vmatprep.subr.bf16.mxu0 0
  %1082 = vmatpush1.bf16.msra.mxu0 0
  %1083 = vmatprep.subr.bf16.mxu0 0
  %1084 = vmatpush1.bf16.msra.mxu0 0
  %1085 = vmatprep.subr.bf16.mxu0 0
  %1086 = vmatpush1.bf16.msra.mxu0 0
  %1087 = vmatprep.subr.bf16.mxu0 0
  %1088 = vmatpush1.bf16.msra.mxu0 0
  %1089 = vmatprep.subr.bf16.mxu0 0
  %1090 = vmatpush1.bf16.msra.mxu0 0
  %1091 = vmatprep.subr.bf16.mxu0 0
  %1092 = vmatpush1.bf16.msra.mxu0 0
  %1093 = vmatprep.subr.bf16.mxu0 0
  %1094 = vmatpush1.bf16.msra.mxu0 0
  %1095 = vmatprep.mubr.bf16.mxu0 0
  %1096 = vmatmul.mubr.bf16.gmra.mrb[0].mxu0 %v1061
  %v1097 = vpop.f32.mrb[0].mxu0
  %v1098 = vadd.f32 0.0, %v1097
  %v1099 = vpop.f32.mrb[0].mxu0
  %v1100 = vpop.f32.mrb[0].mxu0
  %v1101 = vpop.f32.mrb[0].mxu0
  %1102 = vdwg.mxu0
  %v1103 = vadd.f32 %v1055, %v1098
  %v1104 = vxor.u32 %v1103, 2147483648
  %v1105 = vmul.f32 %v1104, 1.442695
  %v1106 = vpow.pop %v1105
  %v1107 = vadd.f32 %v1106, 1.0
  %v1108 = vrcp.pop %v1107
  %v1109 = vmul.f32 1.0, %v1108
  %v1110 = vtanh.pop %v1103
  %v1111 = vmul.f32 %v1109, %v1047
  %1113 = vrot.lane.b32.xlu0 %v1110, 64
  %v1114 = vpop.permute.xlu0 %1113
  %v1116 = vmul.f32 %v1109, %v1114
  %1118 = vrot.lane.b32.xlu0 %v1116, 32
  %v1119 = vpop.permute.xlu0 %1118
  %v1121 = vadd.f32 %v1111, %v1119
  %v1122 = vtanh.pop %v1121
  %1124 = vrot.lane.b32.xlu0 %v1122, 64
  %v1125 = vpop.permute.xlu0 %1124
  %v1127 = vmul.f32 %v1109, %v1125
  %s1128 = scalar_lea.vmem [#allocation3], 56
  %v1129 = vld [vmem:[%s1128] sm:$0xff]
  %v1130 = vpack.c.bf16 %v1127, %v1127
  %1132 = vrot.lane.b32.xlu0 %v1130, 32
  %v1133 = vpop.permute.xlu0 %1132
  %v1135 = vsel %vm615, %v1133, 0
  %1137 = vmatprep.subr.bf16.mxu0 0
  %1138 = vmatpush1.bf16.msra.mxu0 %v611
  %1139 = vmatprep.subr.bf16.mxu0 0
  %1140 = vmatpush1.bf16.msra.mxu0 %v612
  %1141 = vmatprep.subr.bf16.mxu0 0
  %1142 = vmatpush1.bf16.msra.mxu0 0
  %1143 = vmatprep.subr.bf16.mxu0 0
  %1144 = vmatpush1.bf16.msra.mxu0 0
  %1145 = vmatprep.subr.bf16.mxu0 0
  %1146 = vmatpush1.bf16.msra.mxu0 0
  %1147 = vmatprep.subr.bf16.mxu0 0
  %1148 = vmatpush1.bf16.msra.mxu0 0
  %1149 = vmatprep.subr.bf16.mxu0 0
  %1150 = vmatpush1.bf16.msra.mxu0 0
  %1151 = vmatprep.subr.bf16.mxu0 0
  %1152 = vmatpush1.bf16.msra.mxu0 0
  %1153 = vmatprep.subr.bf16.mxu0 0
  %1154 = vmatpush1.bf16.msra.mxu0 0
  %1155 = vmatprep.subr.bf16.mxu0 0
  %1156 = vmatpush1.bf16.msra.mxu0 0
  %1157 = vmatprep.subr.bf16.mxu0 0
  %1158 = vmatpush1.bf16.msra.mxu0 0
  %1159 = vmatprep.subr.bf16.mxu0 0
  %1160 = vmatpush1.bf16.msra.mxu0 0
  %1161 = vmatprep.subr.bf16.mxu0 0
  %1162 = vmatpush1.bf16.msra.mxu0 0
  %1163 = vmatprep.subr.bf16.mxu0 0
  %1164 = vmatpush1.bf16.msra.mxu0 0
  %1165 = vmatprep.subr.bf16.mxu0 0
  %1166 = vmatpush1.bf16.msra.mxu0 0
  %1167 = vmatprep.subr.bf16.mxu0 0
  %1168 = vmatpush1.bf16.msra.mxu0 0
  %1169 = vmatprep.mubr.bf16.mxu0 0
  %1170 = vmatmul.mubr.bf16.gmra.mrb[0].mxu0 %v1135
  %v1171 = vpop.f32.mrb[0].mxu0
  %v1172 = vadd.f32 0.0, %v1171
  %v1173 = vpop.f32.mrb[0].mxu0
  %v1174 = vpop.f32.mrb[0].mxu0
  %v1175 = vpop.f32.mrb[0].mxu0
  %1176 = vdwg.mxu0
  %v1177 = vadd.f32 %v1129, %v1172
  %v1178 = vxor.u32 %v1177, 2147483648
  %v1179 = vmul.f32 %v1178, 1.442695
  %v1180 = vpow.pop %v1179
  %v1181 = vadd.f32 %v1180, 1.0
  %v1182 = vrcp.pop %v1181
  %v1183 = vmul.f32 1.0, %v1182
  %v1184 = vtanh.pop %v1177
  %v1185 = vmul.f32 %v1183, %v1121
  %1187 = vrot.lane.b32.xlu0 %v1184, 64
  %v1188 = vpop.permute.xlu0 %1187
  %v1190 = vmul.f32 %v1183, %v1188
  %1192 = vrot.lane.b32.xlu0 %v1190, 32
  %v1193 = vpop.permute.xlu0 %1192
  %v1195 = vadd.f32 %v1185, %v1193
  %v1196 = vtanh.pop %v1195
  %1198 = vrot.lane.b32.xlu0 %v1196, 64
  %v1199 = vpop.permute.xlu0 %1198
  %v1201 = vmul.f32 %v1183, %v1199
  %v1202 = vpack.c.bf16 %v1201, %v1201
  %v1203 = vld [vmem:[%s7] sm:$0xf]
  %v1204 = vld [vmem:[%s7 + $0x4] sm:$0xf]
  %v1205 = vld [vmem:[%s7 + $0x8] sm:$0xf]
  %v1206 = vld [vmem:[%s7 + $0xc] sm:$0xf]
  %v1207 = vld [vmem:[#allocation5] sm:$0x1]
  %v1209 = vlaneseq
  %v1210 = vshrl.u32 %v1209, 7
  %v1211 = vsub.s32 0, %v1210
  %v1212 = vrot.slane %v1207, %v1211
  %1215 = vrot.lane.b32.xlu0 %v1202, 32
  %v1216 = vpop.permute.xlu0 %1215
  %v1221 = vunpack.c.l.b16 %v1203
  %v1222 = vunpack.c.l.b16 %v1204
  %v1223 = vunpack.c.l.b16 %v1205
  %v1224 = vunpack.c.l.b16 %v1206
  %v1225 = vpack.c.b16 %v1222, %v1221
  %v1226 = vpack.c.b16 %v1224, %v1223
  %v1230 = vsel %vm615, %v1216, 0
  %1232 = vmatprep.subr.bf16.mxu0 0
  %1233 = vmatpush1.bf16.msra.mxu0 %v1225
  %1234 = vmatprep.subr.bf16.mxu0 0
  %1235 = vmatpush1.bf16.msra.mxu0 %v1226
  %1236 = vmatprep.subr.bf16.mxu0 0
  %1237 = vmatpush1.bf16.msra.mxu0 0
  %1238 = vmatprep.subr.bf16.mxu0 0
  %1239 = vmatpush1.bf16.msra.mxu0 0
  %1240 = vmatprep.subr.bf16.mxu0 0
  %1241 = vmatpush1.bf16.msra.mxu0 0
  %1242 = vmatprep.subr.bf16.mxu0 0
  %1243 = vmatpush1.bf16.msra.mxu0 0
  %1244 = vmatprep.subr.bf16.mxu0 0
  %1245 = vmatpush1.bf16.msra.mxu0 0
  %1246 = vmatprep.subr.bf16.mxu0 0
  %1247 = vmatpush1.bf16.msra.mxu0 0
  %1248 = vmatprep.subr.bf16.mxu0 0
  %1249 = vmatpush1.bf16.msra.mxu0 0
  %1250 = vmatprep.subr.bf16.mxu0 0
  %1251 = vmatpush1.bf16.msra.mxu0 0
  %1252 = vmatprep.subr.bf16.mxu0 0
  %1253 = vmatpush1.bf16.msra.mxu0 0
  %1254 = vmatprep.subr.bf16.mxu0 0
  %1255 = vmatpush1.bf16.msra.mxu0 0
  %1256 = vmatprep.subr.bf16.mxu0 0
  %1257 = vmatpush1.bf16.msra.mxu0 0
  %1258 = vmatprep.subr.bf16.mxu0 0
  %1259 = vmatpush1.bf16.msra.mxu0 0
  %1260 = vmatprep.subr.bf16.mxu0 0
  %1261 = vmatpush1.bf16.msra.mxu0 0
  %1262 = vmatprep.subr.bf16.mxu0 0
  %1263 = vmatpush1.bf16.msra.mxu0 0
  %1264 = vmatprep.mubr.bf16.mxu0 0
  %1265 = vmatmul.mubr.bf16.gmra.mrb[0].mxu0 %v1230
  %v1266 = vpop.f32.mrb[0].mxu0
  %v1267 = vadd.f32 %v1212, %v1266
  %v1268 = vpop.f32.mrb[0].mxu0
  %v1269 = vpop.f32.mrb[0].mxu0
  %v1270 = vpop.f32.mrb[0].mxu0
  %1271 = vdwg.mxu0
  %vm1272 = vcmask 7168
  %1273 = vst.msk [vmem:[%s9] sm:$0xff] %vm1272, %v1267
  // Predicated region
  $region45: #{lstm_model_forward.1} parent=0 // pred_check
    _
  $region46: #{lstm_model_forward.1} parent=0 // pred_check_branch
    %1275 = sbr.rel (0) target = $region48
  $region47: #{lstm_model_forward.1} parent=0 // pred_region
    _
  $region48: #{lstm_model_forward.1} parent=0 // pred_fallthru
    _
  // Predicated region
  $region49: #{lstm_model_forward.1} parent=0 // pred_check
    _
  $region50: #{lstm_model_forward.1} parent=0 // pred_check_branch
    %1277 = sbr.rel (0) target = $region52
  $region51: #{lstm_model_forward.1} parent=0 // pred_region
    _
  $region52: #{lstm_model_forward.1} parent=0 // pred_fallthru
    _

</llo_original>
